<compile_context>
chip_gen: v6e
topology: v6e:2x2x1
jax: 0.10.0
libtpu: 0.0.40
codegen_flags: <defaults>
</compile_context>

<pallas_src>
import functools

import numpy as np
import jax
import jax.numpy as jnp
from jax import lax
from jax.experimental import pallas as pl
from jax.experimental.pallas import tpu as pltpu

EPS = 1e-5  # torch.nn.LayerNorm default eps


def _vmem_limit_bytes():
    """Generation-aware scoped-VMEM budget (~3/4 of capacity, capped)."""
    try:
        cap = pltpu.get_tpu_info().vmem_capacity_bytes
    except Exception:
        cap = 64 * 1024 * 1024  # conservative (v7x per-TC capacity)
    return min(int(cap * 3 // 4), 100 * 1024 * 1024)


_VMEM_LIMIT = _vmem_limit_bytes()
# Bigger row tiles keep climbing toward the HBM roofline on 128 MiB parts.
_ROW_TARGET = 1024 if _VMEM_LIMIT >= 90 * 1024 * 1024 else 512


def _pick_window_batch(nw, bn, ws, target_rows):
    """Largest wb dividing nw (so all windows of a block share one batch element
    and the shift-mask block index is simply i % (nw // wb)) with
    wb*ws <= target_rows and, when possible, >= 2 grid steps (v7x dual-TC)."""
    best = 1
    for d in range(1, nw + 1):
        if nw % d == 0 and d * ws <= target_rows and (bn // d >= 2 or d == 1):
            best = d
    return best


def _row_tile(nrows, target):
    """8-aligned row tile for the memory-bound MLP pass; prefers >= 2 steps."""
    if nrows <= 8:
        return nrows
    tile = min(target, (nrows + 7) // 8 * 8)
    while tile > 8 and (nrows + tile - 1) // tile < 2:
        tile = max(8, ((tile // 2) + 7) // 8 * 8)
    return tile


# ----------------- fused norm1 + window attention kernel ---------------------
def _attn_kernel(x_ref, mask_ref, g1_ref, bln1_ref, wqkv_ref, bqkv_ref,
                 pos_ref, wproj_ref, bproj_ref, o_ref, *,
                 num_heads, head_dim, dim, ws, wb, nwb, pad, shift, np_tokens):
    rows = wb * ws
    x = x_ref[...].reshape(rows, dim)                 # (WB*ws, C) raw tokens

    # fused norm1 (f32)
    mu = jnp.mean(x, axis=-1, keepdims=True)
    var = jnp.mean((x - mu) ** 2, axis=-1, keepdims=True)
    xn = (x - mu) * lax.rsqrt(var + EPS) * g1_ref[...] + bln1_ref[...]

    if pad > 0:
        # Zero the symmetric zero-padding rows (LayerNorm of a zero row is the
        # LN bias, not zero).  Validity is a static function of the grid index,
        # so it is computed in-kernel instead of being a B-times-tiled input.
        w_base = (pl.program_id(0) % nwb) * wb
        ridx = lax.broadcasted_iota(jnp.int32, (rows, 1), 0)
        p_orig = (w_base * ws + ridx + shift) % np_tokens
        valid = jnp.logical_and(p_orig >= pad, p_orig < np_tokens - pad)
        xn = jnp.where(valid, xn, 0.0)

    # One qkv GEMM over all WB windows; bf16 operands, f32 accumulation.  The
    # attention scale is pre-folded into the Q columns of wqkv / bqkv.
    qkv = jnp.dot(xn.astype(jnp.bfloat16), wqkv_ref[...],
                  preferred_element_type=jnp.float32) + bqkv_ref[...]

    def heads(base):
        # Column band of qkv -> head-major batch (H*WB, ws, hd) in bf16.
        parts = [
            qkv[:, base + h * head_dim:base + (h + 1) * head_dim]
            .reshape(wb, ws, head_dim)
            for h in range(num_heads)
        ]
        return jnp.concatenate(parts, axis=0).astype(jnp.bfloat16)

    qh, kh, vh = heads(0), heads(dim), heads(2 * dim)

    # Single pair of (window*head)-batched contractions, batch dim = H*WB.
    s = lax.dot_general(qh, kh, (((2,), (2,)), ((0,), (0,))),
                        preferred_element_type=jnp.float32)      # (H*WB, ws, ws)
    bias = (pos_ref[...][:, None, :, :] + mask_ref[...][None, :, :, :]
            ).reshape(num_heads * wb, ws, ws)
    s = s + bias
    s = s - jnp.max(s, axis=-1, keepdims=True)
    e = jnp.exp(s)
    p = e * pl.reciprocal(jnp.sum(e, axis=-1, keepdims=True), approx=True)
    o = lax.dot_general(p.astype(jnp.bfloat16), vh,
                        (((2,), (1,)), ((0,), (0,))),
                        preferred_element_type=jnp.float32)      # (H*WB, ws, hd)

    # Back to (rows, C) lanes (head-minor) to feed one full-width proj GEMM.
    out = jnp.concatenate(
        [o[h * wb:(h + 1) * wb].reshape(rows, head_dim)
         for h in range(num_heads)], axis=-1)
    out = jnp.dot(out.astype(jnp.bfloat16), wproj_ref[...],
                  preferred_element_type=jnp.float32) + bproj_ref[...]
    o_ref[...] = out.reshape(wb, ws, dim)


def window_attention(xw, mask, params, *, num_heads, pad, shift, np_tokens):
    bn, ws, c = xw.shape
    nw = mask.shape[0]
    hd = c // num_heads
    wb = _pick_window_batch(nw, bn, ws, _ROW_TARGET)
    nwb = nw // wb
    kernel = functools.partial(
        _attn_kernel, num_heads=num_heads, head_dim=hd, dim=c, ws=ws, wb=wb,
        nwb=nwb, pad=pad, shift=shift, np_tokens=np_tokens)
    return pl.pallas_call(
        kernel,
        out_shape=jax.ShapeDtypeStruct((bn, ws, c), jnp.float32),
        grid=(bn // wb,),
        in_specs=[
            pl.BlockSpec((wb, ws, c), lambda i: (i, 0, 0)),           # x windows
            pl.BlockSpec((wb, ws, ws), lambda i: (i % nwb, 0, 0)),    # shift mask (un-tiled)
            pl.BlockSpec((1, c), lambda i: (0, 0)),                   # ln1 weight
            pl.BlockSpec((1, c), lambda i: (0, 0)),                   # ln1 bias
            pl.BlockSpec((c, 3 * c), lambda i: (0, 0)),               # wqkv (bf16, Q pre-scaled)
            pl.BlockSpec((1, 3 * c), lambda i: (0, 0)),               # bqkv (f32)
            pl.BlockSpec((num_heads, ws, ws), lambda i: (0, 0, 0)),   # pos bias
            pl.BlockSpec((c, c), lambda i: (0, 0)),                   # wproj (bf16)
            pl.BlockSpec((1, c), lambda i: (0, 0)),                   # bproj
        ],
        out_specs=pl.BlockSpec((wb, ws, c), lambda i: (i, 0, 0)),
        compiler_params=pltpu.CompilerParams(
            dimension_semantics=("parallel",),
            vmem_limit_bytes=_VMEM_LIMIT),
    )(xw, mask, params["ln1_w"], params["ln1_b"], params["wqkv"],
      params["bqkv"], params["pos"], params["wproj"], params["bproj"])


# ----------------- fused residual + norm2 + MLP + residual -------------------
def _mlp_kernel(s_ref, a_ref, g_ref, b_ref, w1_ref, b1_ref, w2_ref, b2_ref, o_ref):
    x = s_ref[...] + a_ref[...]                       # shortcut + attention branch
    mu = jnp.mean(x, axis=-1, keepdims=True)
    var = jnp.mean((x - mu) ** 2, axis=-1, keepdims=True)
    xn = (x - mu) * lax.rsqrt(var + EPS) * g_ref[...] + b_ref[...]
    h = jnp.dot(xn.astype(jnp.bfloat16), w1_ref[...],
                preferred_element_type=jnp.float32) + b1_ref[...]
    h = jax.nn.gelu(h, approximate=False)             # torch nn.GELU() (erf form)
    y = jnp.dot(h.astype(jnp.bfloat16), w2_ref[...],
                preferred_element_type=jnp.float32) + b2_ref[...]
    o_ref[...] = x + y


def residual_mlp(shortcut2d, attn2d, params):
    r, c = shortcut2d.shape
    hdim = params["w1"].shape[1]
    tm = _row_tile(r, _ROW_TARGET)
    # TODO(synk): for C >~ 512 with mlp_ratio=4 on v7x, add a hidden-dim grid
    # axis ("arbitrary") so w1/w2 stream as K-tiles instead of sitting resident.
    return pl.pallas_call(
        _mlp_kernel,
        out_shape=jax.ShapeDtypeStruct((r, c), jnp.float32),
        grid=(pl.cdiv(r, tm),),
        in_specs=[
            pl.BlockSpec((tm, c), lambda i: (i, 0)),
            pl.BlockSpec((tm, c), lambda i: (i, 0)),
            pl.BlockSpec((1, c), lambda i: (0, 0)),
            pl.BlockSpec((1, c), lambda i: (0, 0)),
            pl.BlockSpec((c, hdim), lambda i: (0, 0)),     # w1 (bf16)
            pl.BlockSpec((1, hdim), lambda i: (0, 0)),
            pl.BlockSpec((hdim, c), lambda i: (0, 0)),     # w2 (bf16)
            pl.BlockSpec((1, c), lambda i: (0, 0)),
        ],
        out_specs=pl.BlockSpec((tm, c), lambda i: (i, 0)),
        compiler_params=pltpu.CompilerParams(
            dimension_semantics=("parallel",),
            vmem_limit_bytes=_VMEM_LIMIT),
    )(shortcut2d, attn2d, params["ln2_w"], params["ln2_b"],
      params["w1"], params["b1"], params["w2"], params["b2"])


# --------------------------- full block forward ------------------------------
def mcswin_block(x, attn_mask, params, *, window_size, shift_size, num_heads):
    B, N, C = x.shape
    ws = window_size
    shortcut = x

    pad = (ws - N % ws) % ws
    # matches F.pad(x, (0, 0, pad, pad)): zero-pad both ends of the token axis.
    xp = jnp.pad(x, ((0, 0), (pad, pad), (0, 0))) if pad else x
    Np = xp.shape[1]
    nw = Np // ws

    if shift_size > 0:
        xs = jnp.roll(xp, -shift_size, axis=1)
        mask = attn_mask
        shift = shift_size
    else:
        xs = xp
        mask = jnp.zeros((nw, ws, ws), jnp.float32)
        shift = 0

    xw = xs.reshape(B * nw, ws, C)                    # window_partition
    aw = window_attention(xw, mask, params, num_heads=num_heads,
                          pad=pad, shift=shift, np_tokens=Np)
    y = aw.reshape(B, Np, C)                          # window_reverse (+ transpose)
    if shift_size > 0:
        y = jnp.roll(y, shift_size, axis=1)
    y = y[:, :N, :]

    # TODO(synk): the HBM round-trip of `y` (window_reverse/roll/slice) could be
    # folded into residual_mlp via element-offset index maps / manual DMA.
    out = residual_mlp(shortcut.reshape(B * N, C), y.reshape(B * N, C), params)
    return out.reshape(B, N, C)


# ------------------------------ parameters -----------------------------------
def init_params(key, dim, num_heads, window_size, mlp_ratio):
    """torch-semantics f32 parameters (weights as (in, out))."""
    hidden = int(dim * mlp_ratio)
    ks = jax.random.split(key, 10)

    def lin(k, fan_in, shape):
        bound = 1.0 / np.sqrt(fan_in)
        return jax.random.uniform(k, shape, jnp.float32, -bound, bound)

    return {
        "ln1_w": jnp.ones((1, dim), jnp.float32),
        "ln1_b": jnp.zeros((1, dim), jnp.float32),
        "ln2_w": jnp.ones((1, dim), jnp.float32),
        "ln2_b": jnp.zeros((1, dim), jnp.float32),
        # nn.Parameter(zeros) -> trunc_normal_(std=0.001)
        "pos": 0.001 * jax.random.truncated_normal(
            ks[0], -2.0, 2.0, (num_heads, window_size, window_size), jnp.float32),
        "wqkv": lin(ks[1], dim, (dim, 3 * dim)),
        "bqkv": lin(ks[2], dim, (1, 3 * dim)),
        "wproj": lin(ks[3], dim, (dim, dim)),
        "bproj": lin(ks[4], dim, (1, dim)),
        "w1": lin(ks[5], dim, (dim, hidden)),
        "b1": lin(ks[6], dim, (1, hidden)),
        "w2": lin(ks[7], hidden, (hidden, dim)),
        "b2": lin(ks[8], hidden, (1, dim)),
    }


def prepare_params(p, num_heads):
    """One-time transform into the kernel layout: attention scale folded into
    the Q columns of wqkv/bqkv, MXU weight operands stored as bfloat16."""
    dim = p["wqkv"].shape[0]
    scale = (dim // num_heads) ** (-0.5)
    col_scale = jnp.concatenate(
        [jnp.full((dim,), scale, jnp.float32), jnp.ones((2 * dim,), jnp.float32)])
    q = dict(p)
    q["wqkv"] = (p["wqkv"] * col_scale).astype(jnp.bfloat16)
    q["bqkv"] = p["bqkv"] * col_scale
    q["wproj"] = p["wproj"].astype(jnp.bfloat16)
    q["w1"] = p["w1"].astype(jnp.bfloat16)
    q["w2"] = p["w2"].astype(jnp.bfloat16)
    return q


# ----------------------------- pure-JAX reference ----------------------------
def reference(x, attn_mask, p, *, window_size, shift_size, num_heads):
    B, N, C = x.shape
    ws = window_size
    hd = C // num_heads
    scale = hd ** (-0.5)

    def ln(z, w, b):
        mu = z.mean(-1, keepdims=True)
        var = ((z - mu) ** 2).mean(-1, keepdims=True)
        return (z - mu) / jnp.sqrt(var + EPS) * w.reshape(-1) + b.reshape(-1)

    shortcut = x
    xn = ln(x, p["ln1_w"], p["ln1_b"])
    pad = (ws - N % ws) % ws
    if pad:
        xn = jnp.pad(xn, ((0, 0), (pad, pad), (0, 0)))
    Np = xn.shape[1]
    nw = Np // ws
    if shift_size > 0:
        xs, mask = jnp.roll(xn, -shift_size, axis=1), attn_mask
    else:
        xs, mask = xn, None
    xw = xs.reshape(B * nw, ws, C)
    qkv = xw @ p["wqkv"] + p["bqkv"].reshape(-1)
    qkv = qkv.reshape(B * nw, ws, 3, num_heads, hd).transpose(2, 0, 3, 1, 4)
    q, k, v = qkv[0] * scale, qkv[1], qkv[2]
    attn = jnp.einsum("bhqd,bhkd->bhqk", q, k) + p["pos"][None]
    if mask is not None:
        attn = attn.reshape(B, nw, num_heads, ws, ws) + mask[None, :, None]
        attn = attn.reshape(B * nw, num_heads, ws, ws)
    attn = jax.nn.softmax(attn, axis=-1)
    out = jnp.einsum("bhqk,bhkd->bqhd", attn, v).reshape(B * nw, ws, C)
    out = out @ p["wproj"] + p["bproj"].reshape(-1)
    xs = out.reshape(B, Np, C)
    if shift_size > 0:
        xs = jnp.roll(xs, shift_size, axis=1)
    xs = xs[:, :N, :]
    x1 = shortcut + xs
    h = jax.nn.gelu(ln(x1, p["ln2_w"], p["ln2_b"]) @ p["w1"] + p["b1"].reshape(-1),
                    approximate=False)
    return x1 + h @ p["w2"] + p["b2"].reshape(-1)


# ---------------------------------- main --------------------------------------
if __name__ == "__main__":
    B, N, C = 2, 16, 32
    window_size, shift_size, num_heads, mlp_ratio = 8, 4, 4, 4

    key = jax.random.PRNGKey(0)
    kx, kp = jax.random.split(key)
    x = jax.random.normal(kx, (B, N, C), jnp.float32)
    params = init_params(kp, C, num_heads, window_size, mlp_ratio)
    kparams = prepare_params(params, num_heads)       # kernel-layout (bf16) params

    # standard 1-D shifted-window attention mask: (num_windows, ws, ws)
    Np = N + 2 * ((window_size - N % window_size) % window_size)
    seg = np.zeros(Np, np.float32)
    cnt = 0
    for sl in (slice(0, Np - window_size),
               slice(Np - window_size, Np - shift_size),
               slice(Np - shift_size, Np)):
        seg[sl] = cnt
        cnt += 1
    segw = seg.reshape(Np // window_size, window_size)
    diff = segw[:, :, None] - segw[:, None, :]
    attn_mask = jnp.asarray(np.where(diff != 0, -100.0, 0.0).astype(np.float32))

    out = mcswin_block(x, attn_mask, kparams, window_size=window_size,
                       shift_size=shift_size, num_heads=num_heads)
    out = jax.block_until_ready(out)

    ref = reference(x, attn_mask, params, window_size=window_size,
                    shift_size=shift_size, num_heads=num_heads)
    assert out.shape == (B, N, C)
    # bf16 MXU operands + approx-reciprocal softmax vs. an all-f32 reference.
    np.testing.assert_allclose(np.asarray(out), np.asarray(ref), atol=5e-2, rtol=5e-2)
    print("KERNEL_OK")
</pallas_src>

<mosaic_0001>
module attributes {stable_mosaic.version = 11 : i64} {
  func.func @_attn_kernel(%arg0: i32, %arg1: memref<2x8x32xf32, #tpu.memory_space<vmem>>, %arg2: memref<2x8x8xf32, #tpu.memory_space<vmem>>, %arg3: memref<1x32xf32, #tpu.memory_space<vmem>>, %arg4: memref<1x32xf32, #tpu.memory_space<vmem>>, %arg5: memref<32x96xbf16, #tpu.memory_space<vmem>>, %arg6: memref<1x96xf32, #tpu.memory_space<vmem>>, %arg7: memref<4x8x8xf32, #tpu.memory_space<vmem>>, %arg8: memref<32x32xbf16, #tpu.memory_space<vmem>>, %arg9: memref<1x32xf32, #tpu.memory_space<vmem>>, %arg10: memref<2x8x32xf32, #tpu.memory_space<vmem>>) attributes {dimension_semantics = [#tpu.dimension_semantics<parallel>], iteration_bounds = array<i64: 2>, scalar_prefetch = 0 : i64, scratch_operands = 0 : i64, tpu.core_type = #tpu.core_type<tc>, window_params = [{transform_indices = @transform_0, window_bounds = array<i64: 2, 8, 32>}, {transform_indices = @transform_1, window_bounds = array<i64: 2, 8, 8>}, {pipeline_mode = #tpu.pipeline_mode<synchronous>, transform_indices = @transform_2, window_bounds = array<i64: 1, 32>}, {pipeline_mode = #tpu.pipeline_mode<synchronous>, transform_indices = @transform_3, window_bounds = array<i64: 1, 32>}, {pipeline_mode = #tpu.pipeline_mode<synchronous>, transform_indices = @transform_4, window_bounds = array<i64: 32, 96>}, {pipeline_mode = #tpu.pipeline_mode<synchronous>, transform_indices = @transform_5, window_bounds = array<i64: 1, 96>}, {pipeline_mode = #tpu.pipeline_mode<synchronous>, transform_indices = @transform_6, window_bounds = array<i64: 4, 8, 8>}, {pipeline_mode = #tpu.pipeline_mode<synchronous>, transform_indices = @transform_7, window_bounds = array<i64: 32, 32>}, {pipeline_mode = #tpu.pipeline_mode<synchronous>, transform_indices = @transform_8, window_bounds = array<i64: 1, 32>}, {transform_indices = @transform_9, window_bounds = array<i64: 2, 8, 32>}]} {
    %c0 = arith.constant 0 : index
    %c0_0 = arith.constant 0 : index
    %c0_1 = arith.constant 0 : index
    %0 = vector.load %arg1[%c0, %c0_0, %c0_1] : memref<2x8x32xf32, #tpu.memory_space<vmem>>, vector<2x8x32xf32>
    %1 = vector.shape_cast %0 : vector<2x8x32xf32> to vector<16x32xf32>
    %cst = arith.constant dense<0.000000e+00> : vector<16xf32>
    %2 = vector.multi_reduction <add>, %1, %cst [1] : vector<16x32xf32> to vector<16xf32>
    %3 = vector.shape_cast %2 : vector<16xf32> to vector<16x1xf32>
    %cst_2 = arith.constant 3.200000e+01 : f32
    %4 = vector.broadcast %cst_2 : f32 to vector<16x1xf32>
    %5 = arith.divf %3, %4 : vector<16x1xf32>
    %6 = vector.broadcast %5 : vector<16x1xf32> to vector<16x32xf32>
    %7 = arith.subf %1, %6 : vector<16x32xf32>
    %8 = arith.mulf %7, %7 : vector<16x32xf32>
    %cst_3 = arith.constant dense<0.000000e+00> : vector<16xf32>
    %9 = vector.multi_reduction <add>, %8, %cst_3 [1] : vector<16x32xf32> to vector<16xf32>
    %10 = vector.shape_cast %9 : vector<16xf32> to vector<16x1xf32>
    %cst_4 = arith.constant 3.200000e+01 : f32
    %11 = vector.broadcast %cst_4 : f32 to vector<16x1xf32>
    %12 = arith.divf %10, %11 : vector<16x1xf32>
    %13 = vector.broadcast %5 : vector<16x1xf32> to vector<16x32xf32>
    %14 = arith.subf %1, %13 : vector<16x32xf32>
    %cst_5 = arith.constant 9.99999974E-6 : f32
    %15 = vector.broadcast %cst_5 : f32 to vector<16x1xf32>
    %16 = arith.addf %12, %15 : vector<16x1xf32>
    %17 = math.rsqrt %16 : vector<16x1xf32>
    %18 = vector.broadcast %17 : vector<16x1xf32> to vector<16x32xf32>
    %19 = arith.mulf %14, %18 : vector<16x32xf32>
    %c0_6 = arith.constant 0 : index
    %c0_7 = arith.constant 0 : index
    %20 = vector.load %arg3[%c0_6, %c0_7] : memref<1x32xf32, #tpu.memory_space<vmem>>, vector<1x32xf32>
    %21 = vector.broadcast %20 : vector<1x32xf32> to vector<16x32xf32>
    %22 = arith.mulf %19, %21 : vector<16x32xf32>
    %c0_8 = arith.constant 0 : index
    %c0_9 = arith.constant 0 : index
    %23 = vector.load %arg4[%c0_8, %c0_9] : memref<1x32xf32, #tpu.memory_space<vmem>>, vector<1x32xf32>
    %24 = vector.broadcast %23 : vector<1x32xf32> to vector<16x32xf32>
    %25 = arith.addf %22, %24 : vector<16x32xf32>
    %26 = arith.truncf %25 : vector<16x32xf32> to vector<16x32xbf16>
    %c0_10 = arith.constant 0 : index
    %c0_11 = arith.constant 0 : index
    %27 = vector.load %arg5[%c0_10, %c0_11] : memref<32x96xbf16, #tpu.memory_space<vmem>>, vector<32x96xbf16>
    %cst_12 = arith.constant dense<0.000000e+00> : vector<16x96xf32>
    %28 = tpu.matmul %26, %27, %cst_12 {dimension_numbers = #tpu.dot_dimension_numbers<[1], [0], [0], [1], [0, 0, 1, 1], [], []>} : vector<16x32xbf16>, vector<32x96xbf16>, vector<16x96xf32> -> vector<16x96xf32>
    %c0_13 = arith.constant 0 : index
    %c0_14 = arith.constant 0 : index
    %29 = vector.load %arg6[%c0_13, %c0_14] : memref<1x96xf32, #tpu.memory_space<vmem>>, vector<1x96xf32>
    %30 = vector.broadcast %29 : vector<1x96xf32> to vector<16x96xf32>
    %31 = arith.addf %28, %30 : vector<16x96xf32>
    %32 = vector.extract_strided_slice %31 {offsets = [0, 0], sizes = [16, 8], strides = [1, 1]} : vector<16x96xf32> to vector<16x8xf32>
    %33 = vector.shape_cast %32 : vector<16x8xf32> to vector<2x8x8xf32>
    %34 = vector.extract_strided_slice %31 {offsets = [0, 8], sizes = [16, 8], strides = [1, 1]} : vector<16x96xf32> to vector<16x8xf32>
    %35 = vector.shape_cast %34 : vector<16x8xf32> to vector<2x8x8xf32>
    %36 = vector.extract_strided_slice %31 {offsets = [0, 16], sizes = [16, 8], strides = [1, 1]} : vector<16x96xf32> to vector<16x8xf32>
    %37 = vector.shape_cast %36 : vector<16x8xf32> to vector<2x8x8xf32>
    %38 = vector.extract_strided_slice %31 {offsets = [0, 24], sizes = [16, 8], strides = [1, 1]} : vector<16x96xf32> to vector<16x8xf32>
    %39 = vector.shape_cast %38 : vector<16x8xf32> to vector<2x8x8xf32>
    %40 = tpu.concatenate %33, %35, %37, %39 in 0 : vector<2x8x8xf32>, vector<2x8x8xf32>, vector<2x8x8xf32>, vector<2x8x8xf32> -> vector<8x8x8xf32>
    %41 = arith.truncf %40 : vector<8x8x8xf32> to vector<8x8x8xbf16>
    %42 = vector.extract_strided_slice %31 {offsets = [0, 32], sizes = [16, 8], strides = [1, 1]} : vector<16x96xf32> to vector<16x8xf32>
    %43 = vector.shape_cast %42 : vector<16x8xf32> to vector<2x8x8xf32>
    %44 = vector.extract_strided_slice %31 {offsets = [0, 40], sizes = [16, 8], strides = [1, 1]} : vector<16x96xf32> to vector<16x8xf32>
    %45 = vector.shape_cast %44 : vector<16x8xf32> to vector<2x8x8xf32>
    %46 = vector.extract_strided_slice %31 {offsets = [0, 48], sizes = [16, 8], strides = [1, 1]} : vector<16x96xf32> to vector<16x8xf32>
    %47 = vector.shape_cast %46 : vector<16x8xf32> to vector<2x8x8xf32>
    %48 = vector.extract_strided_slice %31 {offsets = [0, 56], sizes = [16, 8], strides = [1, 1]} : vector<16x96xf32> to vector<16x8xf32>
    %49 = vector.shape_cast %48 : vector<16x8xf32> to vector<2x8x8xf32>
    %50 = tpu.concatenate %43, %45, %47, %49 in 0 : vector<2x8x8xf32>, vector<2x8x8xf32>, vector<2x8x8xf32>, vector<2x8x8xf32> -> vector<8x8x8xf32>
    %51 = arith.truncf %50 : vector<8x8x8xf32> to vector<8x8x8xbf16>
    %52 = vector.extract_strided_slice %31 {offsets = [0, 64], sizes = [16, 8], strides = [1, 1]} : vector<16x96xf32> to vector<16x8xf32>
    %53 = vector.shape_cast %52 : vector<16x8xf32> to vector<2x8x8xf32>
    %54 = vector.extract_strided_slice %31 {offsets = [0, 72], sizes = [16, 8], strides = [1, 1]} : vector<16x96xf32> to vector<16x8xf32>
    %55 = vector.shape_cast %54 : vector<16x8xf32> to vector<2x8x8xf32>
    %56 = vector.extract_strided_slice %31 {offsets = [0, 80], sizes = [16, 8], strides = [1, 1]} : vector<16x96xf32> to vector<16x8xf32>
    %57 = vector.shape_cast %56 : vector<16x8xf32> to vector<2x8x8xf32>
    %58 = vector.extract_strided_slice %31 {offsets = [0, 88], sizes = [16, 8], strides = [1, 1]} : vector<16x96xf32> to vector<16x8xf32>
    %59 = vector.shape_cast %58 : vector<16x8xf32> to vector<2x8x8xf32>
    %60 = tpu.concatenate %53, %55, %57, %59 in 0 : vector<2x8x8xf32>, vector<2x8x8xf32>, vector<2x8x8xf32>, vector<2x8x8xf32> -> vector<8x8x8xf32>
    %61 = arith.truncf %60 : vector<8x8x8xf32> to vector<8x8x8xbf16>
    %cst_15 = arith.constant dense<0.000000e+00> : vector<8x8x8xf32>
    %62 = tpu.matmul %41, %51, %cst_15 {dimension_numbers = #tpu.dot_dimension_numbers<[2], [2], [1], [1], [0, 0, 0, 1, 1, 1], [0], [0]>} : vector<8x8x8xbf16>, vector<8x8x8xbf16>, vector<8x8x8xf32> -> vector<8x8x8xf32>
    %c0_16 = arith.constant 0 : index
    %c0_17 = arith.constant 0 : index
    %c0_18 = arith.constant 0 : index
    %63 = vector.load %arg7[%c0_16, %c0_17, %c0_18] : memref<4x8x8xf32, #tpu.memory_space<vmem>>, vector<4x8x8xf32>
    %64 = vector.shape_cast %63 : vector<4x8x8xf32> to vector<4x1x8x8xf32>
    %c0_19 = arith.constant 0 : index
    %c0_20 = arith.constant 0 : index
    %c0_21 = arith.constant 0 : index
    %65 = vector.load %arg2[%c0_19, %c0_20, %c0_21] : memref<2x8x8xf32, #tpu.memory_space<vmem>>, vector<2x8x8xf32>
    %66 = vector.shape_cast %65 : vector<2x8x8xf32> to vector<1x2x8x8xf32>
    %67 = vector.broadcast %64 : vector<4x1x8x8xf32> to vector<4x2x8x8xf32>
    %68 = vector.broadcast %66 : vector<1x2x8x8xf32> to vector<4x2x8x8xf32>
    %69 = arith.addf %67, %68 : vector<4x2x8x8xf32>
    %70 = vector.shape_cast %69 : vector<4x2x8x8xf32> to vector<8x8x8xf32>
    %71 = arith.addf %62, %70 : vector<8x8x8xf32>
    %cst_22 = arith.constant dense<0xFF800000> : vector<8x8xf32>
    %72 = vector.multi_reduction <maximumf>, %71, %cst_22 [2] : vector<8x8x8xf32> to vector<8x8xf32>
    %73 = vector.shape_cast %72 : vector<8x8xf32> to vector<8x8x1xf32>
    %74 = vector.broadcast %73 : vector<8x8x1xf32> to vector<8x8x8xf32>
    %75 = arith.subf %71, %74 : vector<8x8x8xf32>
    %76 = math.exp %75 : vector<8x8x8xf32>
    %cst_23 = arith.constant dense<0.000000e+00> : vector<8x8xf32>
    %77 = vector.multi_reduction <add>, %76, %cst_23 [2] : vector<8x8x8xf32> to vector<8x8xf32>
    %78 = vector.shape_cast %77 : vector<8x8xf32> to vector<8x8x1xf32>
    %79 = tpu.reciprocal %78 {approx = true} : vector<8x8x1xf32> -> vector<8x8x1xf32>
    %80 = vector.broadcast %79 : vector<8x8x1xf32> to vector<8x8x8xf32>
    %81 = arith.mulf %76, %80 : vector<8x8x8xf32>
    %82 = arith.truncf %81 : vector<8x8x8xf32> to vector<8x8x8xbf16>
    %cst_24 = arith.constant dense<0.000000e+00> : vector<8x8x8xf32>
    %83 = tpu.matmul %82, %61, %cst_24 {dimension_numbers = #tpu.dot_dimension_numbers<[2], [1], [1], [2], [0, 0, 0, 1, 1, 2], [0], [0]>} : vector<8x8x8xbf16>, vector<8x8x8xbf16>, vector<8x8x8xf32> -> vector<8x8x8xf32>
    %84 = vector.extract_strided_slice %83 {offsets = [0, 0, 0], sizes = [2, 8, 8], strides = [1, 1, 1]} : vector<8x8x8xf32> to vector<2x8x8xf32>
    %85 = vector.shape_cast %84 : vector<2x8x8xf32> to vector<16x8xf32>
    %86 = vector.extract_strided_slice %83 {offsets = [2, 0, 0], sizes = [2, 8, 8], strides = [1, 1, 1]} : vector<8x8x8xf32> to vector<2x8x8xf32>
    %87 = vector.shape_cast %86 : vector<2x8x8xf32> to vector<16x8xf32>
    %88 = vector.extract_strided_slice %83 {offsets = [4, 0, 0], sizes = [2, 8, 8], strides = [1, 1, 1]} : vector<8x8x8xf32> to vector<2x8x8xf32>
    %89 = vector.shape_cast %88 : vector<2x8x8xf32> to vector<16x8xf32>
    %90 = vector.extract_strided_slice %83 {offsets = [6, 0, 0], sizes = [2, 8, 8], strides = [1, 1, 1]} : vector<8x8x8xf32> to vector<2x8x8xf32>
    %91 = vector.shape_cast %90 : vector<2x8x8xf32> to vector<16x8xf32>
    %92 = tpu.concatenate %85, %87, %89, %91 in 1 : vector<16x8xf32>, vector<16x8xf32>, vector<16x8xf32>, vector<16x8xf32> -> vector<16x32xf32>
    %93 = arith.truncf %92 : vector<16x32xf32> to vector<16x32xbf16>
    %c0_25 = arith.constant 0 : index
    %c0_26 = arith.constant 0 : index
    %94 = vector.load %arg8[%c0_25, %c0_26] : memref<32x32xbf16, #tpu.memory_space<vmem>>, vector<32x32xbf16>
    %cst_27 = arith.constant dense<0.000000e+00> : vector<16x32xf32>
    %95 = tpu.matmul %93, %94, %cst_27 {dimension_numbers = #tpu.dot_dimension_numbers<[1], [0], [0], [1], [0, 0, 1, 1], [], []>} : vector<16x32xbf16>, vector<32x32xbf16>, vector<16x32xf32> -> vector<16x32xf32>
    %c0_28 = arith.constant 0 : index
    %c0_29 = arith.constant 0 : index
    %96 = vector.load %arg9[%c0_28, %c0_29] : memref<1x32xf32, #tpu.memory_space<vmem>>, vector<1x32xf32>
    %97 = vector.broadcast %96 : vector<1x32xf32> to vector<16x32xf32>
    %98 = arith.addf %95, %97 : vector<16x32xf32>
    %99 = vector.shape_cast %98 : vector<16x32xf32> to vector<2x8x32xf32>
    %c0_30 = arith.constant 0 : index
    %c0_31 = arith.constant 0 : index
    %c0_32 = arith.constant 0 : index
    %100 = vector.load %arg10[%c0_30, %c0_31, %c0_32] : memref<2x8x32xf32, #tpu.memory_space<vmem>>, vector<2x8x32xf32>
    tpu.vector_store %arg10[%c0_30, %c0_31, %c0_32], %99 {strides = array<i32>} : memref<2x8x32xf32, #tpu.memory_space<vmem>>, vector<2x8x32xf32>,
    return
  }
  func.func @transform_0(%arg0: i32) -> (i32, i32, i32) {
    %c0_i32 = arith.constant 0 : i32
    %c0_i32_0 = arith.constant 0 : i32
    %c0_i32_1 = arith.constant 0 : i32
    return %arg0, %c0_i32, %c0_i32_0 : i32, i32, i32
  }
  func.func @transform_1(%arg0: i32) -> (i32, i32, i32) {
    %c1_i32 = arith.constant 1 : i32
    %c0_i32 = arith.constant 0 : i32
    %0 = arith.cmpi eq, %c1_i32, %c0_i32 : i32
    %c1_i32_0 = arith.constant 1 : i32
    %1 = arith.select %0, %c1_i32_0, %c1_i32 : i32
    %2 = arith.remsi %arg0, %1 : i32
    %c0_i32_1 = arith.constant 0 : i32
    %3 = arith.cmpi ne, %2, %c0_i32_1 : i32
    %c0_i32_2 = arith.constant 0 : i32
    %4 = arith.cmpi slt, %2, %c0_i32_2 : i32
    %c0_i32_3 = arith.constant 0 : i32
    %5 = arith.cmpi slt, %1, %c0_i32_3 : i32
    %6 = arith.xori %4, %5 : i1
    %7 = arith.andi %6, %3 : i1
    %8 = arith.addi %2, %1 : i32
    %9 = arith.select %7, %8, %2 : i32
    %c0_i32_4 = arith.constant 0 : i32
    %c0_i32_5 = arith.constant 0 : i32
    %c0_i32_6 = arith.constant 0 : i32
    return %9, %c0_i32_4, %c0_i32_5 : i32, i32, i32
  }
  func.func @transform_2(%arg0: i32) -> (i32, i32) {
    %c0_i32 = arith.constant 0 : i32
    %c0_i32_0 = arith.constant 0 : i32
    %c0_i32_1 = arith.constant 0 : i32
    return %c0_i32, %c0_i32_0 : i32, i32
  }
  func.func @transform_3(%arg0: i32) -> (i32, i32) {
    %c0_i32 = arith.constant 0 : i32
    %c0_i32_0 = arith.constant 0 : i32
    %c0_i32_1 = arith.constant 0 : i32
    return %c0_i32, %c0_i32_0 : i32, i32
  }
  func.func @transform_4(%arg0: i32) -> (i32, i32) {
    %c0_i32 = arith.constant 0 : i32
    %c0_i32_0 = arith.constant 0 : i32
    %c0_i32_1 = arith.constant 0 : i32
    return %c0_i32, %c0_i32_0 : i32, i32
  }
  func.func @transform_5(%arg0: i32) -> (i32, i32) {
    %c0_i32 = arith.constant 0 : i32
    %c0_i32_0 = arith.constant 0 : i32
    %c0_i32_1 = arith.constant 0 : i32
    return %c0_i32, %c0_i32_0 : i32, i32
  }
  func.func @transform_6(%arg0: i32) -> (i32, i32, i32) {
    %c0_i32 = arith.constant 0 : i32
    %c0_i32_0 = arith.constant 0 : i32
    %c0_i32_1 = arith.constant 0 : i32
    %c0_i32_2 = arith.constant 0 : i32
    return %c0_i32, %c0_i32_0, %c0_i32_1 : i32, i32, i32
  }
  func.func @transform_7(%arg0: i32) -> (i32, i32) {
    %c0_i32 = arith.constant 0 : i32
    %c0_i32_0 = arith.constant 0 : i32
    %c0_i32_1 = arith.constant 0 : i32
    return %c0_i32, %c0_i32_0 : i32, i32
  }
  func.func @transform_8(%arg0: i32) -> (i32, i32) {
    %c0_i32 = arith.constant 0 : i32
    %c0_i32_0 = arith.constant 0 : i32
    %c0_i32_1 = arith.constant 0 : i32
    return %c0_i32, %c0_i32_0 : i32, i32
  }
  func.func @transform_9(%arg0: i32) -> (i32, i32, i32) {
    %c0_i32 = arith.constant 0 : i32
    %c0_i32_0 = arith.constant 0 : i32
    %c0_i32_1 = arith.constant 0 : i32
    return %arg0, %c0_i32, %c0_i32_0 : i32, i32, i32
  }
}

</mosaic_0001>

<llo_original>
// kernel: tpu_custom_call.1
$region0: #{tpu_custom_call.1}
  #allocation0 [shape = 'u32[]', space=smem, size = 0x4, offset = 0x4, fixed_abs, tag = 'smem constant byte address 0x4 - core index']
  #allocation1 [shape = 'u32[144,128]{1,0:T(1,128)}', space=vmem, size = 0x12000, scoped, tag = 'internal scratch']
  %s0 = inlined_call_operand.hbm [shape: f32[4,8,32], index: 0, kind: input, shape index: {}]
  %s1 = inlined_call_operand.hbm [shape: f32[2,8,8], index: 1, kind: input, shape index: {}]
  %s2 = inlined_call_operand.vmem [shape: f32[1,32], index: 2, kind: input, shape index: {}]
  %s3 = inlined_call_operand.vmem [shape: f32[1,32], index: 3, kind: input, shape index: {}]
  %s4 = inlined_call_operand.hbm [shape: bf16[32,96], index: 4, kind: input, shape index: {}]
  %s5 = inlined_call_operand.vmem [shape: f32[1,96], index: 5, kind: input, shape index: {}]
  %s6 = inlined_call_operand.hbm [shape: f32[4,8,8], index: 6, kind: input, shape index: {}]
  %s7 = inlined_call_operand.hbm [shape: bf16[32,32], index: 7, kind: input, shape index: {}]
  %s8 = inlined_call_operand.vmem [shape: f32[1,32], index: 8, kind: input, shape index: {}]
  %s9 = inlined_call_operand.hbm [shape: f32[4,8,32], index: 9, kind: output, shape index: {}]
  %s10 = sld [smem:[#allocation0]]
  $region89: #{tpu_custom_call.1} parent=0
    _
  %s12 = ssub.s32 1, %s10
  %s13 = scalar_select 0, %s12, %s10
  $region1: #{tpu_custom_call.1} parent=0
    #allocation2 [shape = 'u8[16384]{0}', space=vmem, size = 0x4000, scoped, tag = 'input window, operand 0']
    #allocation3 [shape = 's32[2]{0}', space=sflag, size = 0x8, scoped, tag = 'scoped memory for tpu_custom_call.1']
    #allocation4 [shape = 's32[2]{0}', space=sflag, size = 0x8, scoped, tag = 'scoped memory for tpu_custom_call.1']
    #allocation5 [shape = 'u8[8192]{0}', space=vmem, size = 0x2000, scoped, tag = 'input window, operand 1, single buffered']
    #allocation6 [shape = 's32[1]{0}', space=sflag, size = 0x4, scoped, tag = 'scoped memory for tpu_custom_call.1']
    #allocation7 [shape = 'u8[8192]{0}', space=vmem, size = 0x2000, scoped, tag = 'input window, operand 4, single buffered']
    #allocation8 [shape = 'u8[16384]{0}', space=vmem, size = 0x4000, scoped, tag = 'input window, operand 6, single buffered']
    #allocation9 [shape = 's32[1]{0}', space=sflag, size = 0x4, scoped, tag = 'scoped memory for tpu_custom_call.1']
    #allocation10 [shape = 'u8[8192]{0}', space=vmem, size = 0x2000, scoped, tag = 'input window, operand 7, single buffered']
    #allocation11 [shape = 'u8[16384]{0}', space=vmem, size = 0x4000, scoped, tag = 'output window, operand 0']
    %14 = vsyncpa [#allocation3], 0
    %s15 = scalar_lea.sflag [#allocation3], 1
    %16 = vsyncpa %s15, 0
    %17 = vsyncpa [#allocation6], 0
    %18 = vsyncpa [#allocation9], 0
    %19 = vsyncpa [#allocation4], 0
    %s20 = scalar_lea.sflag [#allocation4], 1
    %21 = vsyncpa %s20, 0
    loop: start=0, step=1, limit=4
    $region2: #{tpu_custom_call.1} parent=1 // loop_pre_header
      _
    $region3: #{tpu_custom_call.1} parent=1 // loop_header
      %s23 = sphi 0, %s27
      %p24 = scmp.ge.s32.totalorder %s23, 4
      %s33 = sphi 0, %s35
      %s36 = sphi 0, %s33
      %s37 = sphi 0, %s36
      %s53 = sphi 0, %s37
      %s57 = sphi 0, %s57
      %s59 = sphi 0, %s57
      %s60 = sphi 0, %s59
      %s74 = sphi 0, %s60
      %s78 = sphi 0, %s78
      %s80 = sphi 0, %s78
      %s81 = sphi 0, %s80
      %s95 = sphi 0, %s81
      %s99 = sphi 0, %s99
      %s101 = sphi 0, %s99
      %s102 = sphi 0, %s101
      %s116 = sphi 0, %s102
      %s120 = sphi 0, %s120
      %s122 = sphi 0, %s120
      %s123 = sphi 0, %s122
      %s137 = sphi 0, %s123
      %s141 = sphi 0, %s141
      %s143 = sphi 0, %s141
      %s144 = sphi 0, %s143
      %s158 = sphi 0, %s144
      %s162 = sphi 0, %s162
      %s164 = sphi 0, %s162
      %s165 = sphi 0, %s164
      %s179 = sphi 0, %s165
      %s183 = sphi 0, %s183
      %s185 = sphi 0, %s183
      %s186 = sphi 0, %s185
      %s200 = sphi 0, %s186
      %s204 = sphi 0, %s204
      %s206 = sphi 0, %s204
      %s207 = sphi 0, %s206
      %s221 = sphi 0, %s207
      %s227 = sphi 0, %s229
      %s230 = sphi 0, %s227
      %s231 = sphi 0, %s230
      %s247 = sphi 0, %s231
    $region4: #{tpu_custom_call.1} parent=1 // loop_header_branch
      %26 = sbr.rel (%p24) target = $region8
    $region5: #{tpu_custom_call.1} parent=1 // loop_body
      %s28 = ssub.s32 %s23, 1
      %s29 = ssub.s32 %s23, 2
      %s30 = sadd.s32 %s23, 1
      %s31 = ssub.s32 %s23, %s30
      %p32 = scmp.eq.s32.totalorder %s31, 0
      %s34 = sadd.s32 %s33, 1
      %s35 = scalar_select %p32, %s33, %s34
      %p38 = pneg %p32
      %p39 = scmp.eq.s32.totalorder %s23, 1
      %p40 = por %p38, %p39
      %p41 = scmp.ne.s32.totalorder %s33, %s36
      %p42 = scmp.eq.s32.totalorder %s23, 0
      %p43 = por %p41, %p42
      %p44 = scmp.ne.s32.totalorder %s33, %s36
      %p45 = scmp.eq.s32.totalorder %s28, 1
      %p46 = por %p44, %p45
      %p47 = scmp.ne.s32.totalorder %s36, %s37
      %p48 = scmp.eq.s32.totalorder %s28, 0
      %p49 = por %p47, %p48
      %p50 = scmp.ne.s32.totalorder %s36, %s37
      %p51 = scmp.eq.s32.totalorder %s29, 1
      %p52 = por %p50, %p51
      %p54 = scmp.ne.s32.totalorder %s37, %s53
      %p55 = scmp.eq.s32.totalorder %s29, 0
      %p56 = por %p54, %p55
      %s58 = sadd.s32 %s57, 1
      %p61 = scmp.eq.s32.totalorder %s23, 1
      %p62 = scmp.ne.s32.totalorder %s57, %s59
      %p63 = scmp.eq.s32.totalorder %s23, 0
      %p64 = por %p62, %p63
      %p65 = scmp.ne.s32.totalorder %s57, %s59
      %p66 = scmp.eq.s32.totalorder %s28, 1
      %p67 = por %p65, %p66
      %p68 = scmp.ne.s32.totalorder %s59, %s60
      %p69 = scmp.eq.s32.totalorder %s28, 0
      %p70 = por %p68, %p69
      %p71 = scmp.ne.s32.totalorder %s59, %s60
      %p72 = scmp.eq.s32.totalorder %s29, 1
      %p73 = por %p71, %p72
      %p75 = scmp.ne.s32.totalorder %s60, %s74
      %p76 = scmp.eq.s32.totalorder %s29, 0
      %p77 = por %p75, %p76
      %s79 = sadd.s32 %s78, 1
      %p82 = scmp.eq.s32.totalorder %s23, 1
      %p83 = scmp.ne.s32.totalorder %s78, %s80
      %p84 = scmp.eq.s32.totalorder %s23, 0
      %p85 = por %p83, %p84
      %p86 = scmp.ne.s32.totalorder %s78, %s80
      %p87 = scmp.eq.s32.totalorder %s28, 1
      %p88 = por %p86, %p87
      %p89 = scmp.ne.s32.totalorder %s80, %s81
      %p90 = scmp.eq.s32.totalorder %s28, 0
      %p91 = por %p89, %p90
      %p92 = scmp.ne.s32.totalorder %s80, %s81
      %p93 = scmp.eq.s32.totalorder %s29, 1
      %p94 = por %p92, %p93
      %p96 = scmp.ne.s32.totalorder %s81, %s95
      %p97 = scmp.eq.s32.totalorder %s29, 0
      %p98 = por %p96, %p97
      %s100 = sadd.s32 %s99, 1
      %p103 = scmp.eq.s32.totalorder %s23, 1
      %p104 = scmp.ne.s32.totalorder %s99, %s101
      %p105 = scmp.eq.s32.totalorder %s23, 0
      %p106 = por %p104, %p105
      %p107 = scmp.ne.s32.totalorder %s99, %s101
      %p108 = scmp.eq.s32.totalorder %s28, 1
      %p109 = por %p107, %p108
      %p110 = scmp.ne.s32.totalorder %s101, %s102
      %p111 = scmp.eq.s32.totalorder %s28, 0
      %p112 = por %p110, %p111
      %p113 = scmp.ne.s32.totalorder %s101, %s102
      %p114 = scmp.eq.s32.totalorder %s29, 1
      %p115 = por %p113, %p114
      %p117 = scmp.ne.s32.totalorder %s102, %s116
      %p118 = scmp.eq.s32.totalorder %s29, 0
      %p119 = por %p117, %p118
      %s121 = sadd.s32 %s120, 1
      %p124 = scmp.eq.s32.totalorder %s23, 1
      %p125 = scmp.ne.s32.totalorder %s120, %s122
      %p126 = scmp.eq.s32.totalorder %s23, 0
      %p127 = por %p125, %p126
      %p128 = scmp.ne.s32.totalorder %s120, %s122
      %p129 = scmp.eq.s32.totalorder %s28, 1
      %p130 = por %p128, %p129
      %p131 = scmp.ne.s32.totalorder %s122, %s123
      %p132 = scmp.eq.s32.totalorder %s28, 0
      %p133 = por %p131, %p132
      %p134 = scmp.ne.s32.totalorder %s122, %s123
      %p135 = scmp.eq.s32.totalorder %s29, 1
      %p136 = por %p134, %p135
      %p138 = scmp.ne.s32.totalorder %s123, %s137
      %p139 = scmp.eq.s32.totalorder %s29, 0
      %p140 = por %p138, %p139
      %s142 = sadd.s32 %s141, 1
      %p145 = scmp.eq.s32.totalorder %s23, 1
      %p146 = scmp.ne.s32.totalorder %s141, %s143
      %p147 = scmp.eq.s32.totalorder %s23, 0
      %p148 = por %p146, %p147
      %p149 = scmp.ne.s32.totalorder %s141, %s143
      %p150 = scmp.eq.s32.totalorder %s28, 1
      %p151 = por %p149, %p150
      %p152 = scmp.ne.s32.totalorder %s143, %s144
      %p153 = scmp.eq.s32.totalorder %s28, 0
      %p154 = por %p152, %p153
      %p155 = scmp.ne.s32.totalorder %s143, %s144
      %p156 = scmp.eq.s32.totalorder %s29, 1
      %p157 = por %p155, %p156
      %p159 = scmp.ne.s32.totalorder %s144, %s158
      %p160 = scmp.eq.s32.totalorder %s29, 0
      %p161 = por %p159, %p160
      %s163 = sadd.s32 %s162, 1
      %p166 = scmp.eq.s32.totalorder %s23, 1
      %p167 = scmp.ne.s32.totalorder %s162, %s164
      %p168 = scmp.eq.s32.totalorder %s23, 0
      %p169 = por %p167, %p168
      %p170 = scmp.ne.s32.totalorder %s162, %s164
      %p171 = scmp.eq.s32.totalorder %s28, 1
      %p172 = por %p170, %p171
      %p173 = scmp.ne.s32.totalorder %s164, %s165
      %p174 = scmp.eq.s32.totalorder %s28, 0
      %p175 = por %p173, %p174
      %p176 = scmp.ne.s32.totalorder %s164, %s165
      %p177 = scmp.eq.s32.totalorder %s29, 1
      %p178 = por %p176, %p177
      %p180 = scmp.ne.s32.totalorder %s165, %s179
      %p181 = scmp.eq.s32.totalorder %s29, 0
      %p182 = por %p180, %p181
      %s184 = sadd.s32 %s183, 1
      %p187 = scmp.eq.s32.totalorder %s23, 1
      %p188 = scmp.ne.s32.totalorder %s183, %s185
      %p189 = scmp.eq.s32.totalorder %s23, 0
      %p190 = por %p188, %p189
      %p191 = scmp.ne.s32.totalorder %s183, %s185
      %p192 = scmp.eq.s32.totalorder %s28, 1
      %p193 = por %p191, %p192
      %p194 = scmp.ne.s32.totalorder %s185, %s186
      %p195 = scmp.eq.s32.totalorder %s28, 0
      %p196 = por %p194, %p195
      %p197 = scmp.ne.s32.totalorder %s185, %s186
      %p198 = scmp.eq.s32.totalorder %s29, 1
      %p199 = por %p197, %p198
      %p201 = scmp.ne.s32.totalorder %s186, %s200
      %p202 = scmp.eq.s32.totalorder %s29, 0
      %p203 = por %p201, %p202
      %s205 = sadd.s32 %s204, 1
      %p208 = scmp.eq.s32.totalorder %s23, 1
      %p209 = scmp.ne.s32.totalorder %s204, %s206
      %p210 = scmp.eq.s32.totalorder %s23, 0
      %p211 = por %p209, %p210
      %p212 = scmp.ne.s32.totalorder %s204, %s206
      %p213 = scmp.eq.s32.totalorder %s28, 1
      %p214 = por %p212, %p213
      %p215 = scmp.ne.s32.totalorder %s206, %s207
      %p216 = scmp.eq.s32.totalorder %s28, 0
      %p217 = por %p215, %p216
      %p218 = scmp.ne.s32.totalorder %s206, %s207
      %p219 = scmp.eq.s32.totalorder %s29, 1
      %p220 = por %p218, %p219
      %p222 = scmp.ne.s32.totalorder %s207, %s221
      %p223 = scmp.eq.s32.totalorder %s29, 0
      %p224 = por %p222, %p223
      %s225 = ssub.s32 %s23, %s30
      %p226 = scmp.eq.s32.totalorder %s225, 0
      %s228 = sadd.s32 %s227, 1
      %s229 = scalar_select %p226, %s227, %s228
      %p232 = pneg %p226
      %p233 = scmp.eq.s32.totalorder %s23, 1
      %p234 = por %p232, %p233
      %p235 = scmp.ne.s32.totalorder %s227, %s230
      %p236 = scmp.eq.s32.totalorder %s23, 0
      %p237 = por %p235, %p236
      %p238 = scmp.ne.s32.totalorder %s227, %s230
      %p239 = scmp.eq.s32.totalorder %s28, 1
      %p240 = por %p238, %p239
      %p241 = scmp.ne.s32.totalorder %s230, %s231
      %p242 = scmp.eq.s32.totalorder %s28, 0
      %p243 = por %p241, %p242
      %p244 = scmp.ne.s32.totalorder %s230, %s231
      %p245 = scmp.eq.s32.totalorder %s29, 1
      %p246 = por %p244, %p245
      %p248 = scmp.ne.s32.totalorder %s231, %s247
      %p249 = scmp.eq.s32.totalorder %s29, 0
      %p250 = por %p248, %p249
      %p251 = scmp.le.s32.totalorder 1, %s23
      %p252 = scmp.lt.s32.totalorder %s23, 3
      %p253 = pnand %p251, %p252
      %p254 = pneg %p253
      // Predicated region
      $region9: #{tpu_custom_call.1} parent=5 // pred_check
        _
      $region10: #{tpu_custom_call.1} parent=5 // pred_check_branch
        %256 = sbr.rel (%p253) target = $region12
      $region11: #{tpu_custom_call.1} parent=5 // pred_region
        %s257 = ssub.s32 %s23, 1
        // Predicated region
        $region13: #{tpu_custom_call.1} parent=11 // pred_check
          %p258 = pneg %p70
        $region14: #{tpu_custom_call.1} parent=11 // pred_check_branch
          %260 = sbr.rel (%p258) target = $region16
        $region15: #{tpu_custom_call.1} parent=11 // pred_region
          %s262 = ssub.s32 256, 256
          %263 = vsyncadd [#allocation6], %s262
          %s264 = sshll.u32 [#allocation5], 4
          %s265 = int_to_ptr.vmem [resolvable:$true] %s264
          %270 = dma.hbm_to_vmem [thread:$0]  %s1, 256, %s265, [#allocation6], 128, 128, 8
        $region16: #{tpu_custom_call.1} parent=11 // pred_fallthru
          _
        // Predicated region
        $region17: #{tpu_custom_call.1} parent=11 // pred_check
          %p271 = pneg %p91
        $region18: #{tpu_custom_call.1} parent=11 // pred_check_branch
          %273 = sbr.rel (%p271) target = $region20
        $region19: #{tpu_custom_call.1} parent=11 // pred_region
          _
        $region20: #{tpu_custom_call.1} parent=11 // pred_fallthru
          _
        // Predicated region
        $region21: #{tpu_custom_call.1} parent=11 // pred_check
          %p274 = pneg %p112
        $region22: #{tpu_custom_call.1} parent=11 // pred_check_branch
          %276 = sbr.rel (%p274) target = $region24
        $region23: #{tpu_custom_call.1} parent=11 // pred_region
          _
        $region24: #{tpu_custom_call.1} parent=11 // pred_fallthru
          _
        // Predicated region
        $region25: #{tpu_custom_call.1} parent=11 // pred_check
          %p277 = pneg %p133
        $region26: #{tpu_custom_call.1} parent=11 // pred_check_branch
          %279 = sbr.rel (%p277) target = $region28
        $region27: #{tpu_custom_call.1} parent=11 // pred_region
          %s281 = ssub.s32 256, 256
          %282 = vsyncadd [#allocation6], %s281
          %s283 = sshll.u32 [#allocation7], 4
          %s284 = int_to_ptr.vmem [resolvable:$true] %s283
          %289 = dma.hbm_to_vmem [thread:$0]  %s4, 256, %s284, [#allocation6], 64, 64, 4
        $region28: #{tpu_custom_call.1} parent=11 // pred_fallthru
          _
        // Predicated region
        $region29: #{tpu_custom_call.1} parent=11 // pred_check
          %p290 = pneg %p154
        $region30: #{tpu_custom_call.1} parent=11 // pred_check_branch
          %292 = sbr.rel (%p290) target = $region32
        $region31: #{tpu_custom_call.1} parent=11 // pred_region
          _
        $region32: #{tpu_custom_call.1} parent=11 // pred_fallthru
          _
        // Predicated region
        $region33: #{tpu_custom_call.1} parent=11 // pred_check
          %p293 = pneg %p175
        $region34: #{tpu_custom_call.1} parent=11 // pred_check_branch
          %295 = sbr.rel (%p293) target = $region36
        $region35: #{tpu_custom_call.1} parent=11 // pred_region
          %s297 = ssub.s32 512, 512
          %298 = vsyncadd [#allocation9], %s297
          %s299 = sshll.u32 [#allocation8], 4
          %s300 = int_to_ptr.vmem [resolvable:$true] %s299
          %305 = dma.hbm_to_vmem [thread:$0]  %s6, 512, %s300, [#allocation9], 128, 128, 8
        $region36: #{tpu_custom_call.1} parent=11 // pred_fallthru
          _
        // Predicated region
        $region37: #{tpu_custom_call.1} parent=11 // pred_check
          %p306 = pneg %p196
        $region38: #{tpu_custom_call.1} parent=11 // pred_check_branch
          %308 = sbr.rel (%p306) target = $region40
        $region39: #{tpu_custom_call.1} parent=11 // pred_region
          %s310 = ssub.s32 256, 256
          %311 = vsyncadd [#allocation9], %s310
          %s312 = sshll.u32 [#allocation10], 4
          %s313 = int_to_ptr.vmem [resolvable:$true] %s312
          %318 = dma.hbm_to_vmem [thread:$0]  %s7, 256, %s313, [#allocation9], 64, 64, 4
        $region40: #{tpu_custom_call.1} parent=11 // pred_fallthru
          _
        // Predicated region
        $region41: #{tpu_custom_call.1} parent=11 // pred_check
          %p319 = pneg %p217
        $region42: #{tpu_custom_call.1} parent=11 // pred_check_branch
          %321 = sbr.rel (%p319) target = $region44
        $region43: #{tpu_custom_call.1} parent=11 // pred_region
          _
        $region44: #{tpu_custom_call.1} parent=11 // pred_fallthru
          _
      $region12: #{tpu_custom_call.1} parent=5 // pred_fallthru
        _
      %p322 = scmp.lt.s32.totalorder %s23, 2
      // Predicated region
      $region45: #{tpu_custom_call.1} parent=5 // pred_check
        %p323 = pneg %p322
      $region46: #{tpu_custom_call.1} parent=5 // pred_check_branch
        %325 = sbr.rel (%p323) target = $region48
      $region47: #{tpu_custom_call.1} parent=5 // pred_region
        // Predicated region
        $region49: #{tpu_custom_call.1} parent=47 // pred_check
          %p326 = pneg %p43
        $region50: #{tpu_custom_call.1} parent=47 // pred_check_branch
          %328 = sbr.rel (%p326) target = $region52
        $region51: #{tpu_custom_call.1} parent=47 // pred_region
          %s329 = sand.u32 %s33, 1
          %s330 = scalar_lea.sflag [#allocation3], %s329
          %s331 = sand.u32 %s33, 1
          %s332 = smul.addr %s331, 16
          %s333 = scalar_lea.vmem [#allocation2], %s332
          %s334 = smul.u32 2, %s23
          %s336 = ssub.s32 256, 256
          %337 = vsyncadd %s330, %s336
          %s338 = smul.addr %s334, 128
          %s339 = scalar_lea.hbm %s0, %s338
          %s340 = sshll.u32 %s333, 4
          %s341 = int_to_ptr.vmem [resolvable:$true] %s340
          %346 = dma.hbm_to_vmem [thread:$0]  %s339, 256, %s341, %s330, 128, 128, 8
        $region52: #{tpu_custom_call.1} parent=47 // pred_fallthru
          _
      $region48: #{tpu_custom_call.1} parent=5 // pred_fallthru
        _
      %p347 = scmp.le.s32.totalorder 1, %s23
      %p348 = scmp.lt.s32.totalorder %s23, 3
      %p349 = pnand %p347, %p348
      %p350 = pneg %p349
      // Predicated region
      $region53: #{tpu_custom_call.1} parent=5 // pred_check
        _
      $region54: #{tpu_custom_call.1} parent=5 // pred_check_branch
        %352 = sbr.rel (%p349) target = $region56
      $region55: #{tpu_custom_call.1} parent=5 // pred_region
        %s353 = ssub.s32 %s23, 1
        %s354 = sand.u32 %s36, 1
        %s355 = scalar_lea.sflag [#allocation3], %s354
        %s356 = sand.u32 %s36, 1
        %s357 = smul.addr %s356, 16
        %s358 = scalar_lea.vmem [#allocation2], %s357
        // Predicated region
        $region57: #{tpu_custom_call.1} parent=55 // pred_check
          %p359 = pneg %p49
        $region58: #{tpu_custom_call.1} parent=55 // pred_check_branch
          %361 = sbr.rel (%p359) target = $region60
        $region59: #{tpu_custom_call.1} parent=55 // pred_region
          %362 = dma.done %s355, 256
        $region60: #{tpu_custom_call.1} parent=55 // pred_fallthru
          _
        // Predicated region
        $region61: #{tpu_custom_call.1} parent=55 // pred_check
          %p363 = pneg %p70
        $region62: #{tpu_custom_call.1} parent=55 // pred_check_branch
          %365 = sbr.rel (%p363) target = $region64
        $region63: #{tpu_custom_call.1} parent=55 // pred_region
          %366 = dma.done [#allocation6], 256
        $region64: #{tpu_custom_call.1} parent=55 // pred_fallthru
          _
        // Predicated region
        $region65: #{tpu_custom_call.1} parent=55 // pred_check
          %p367 = pneg %p133
        $region66: #{tpu_custom_call.1} parent=55 // pred_check_branch
          %369 = sbr.rel (%p367) target = $region68
        $region67: #{tpu_custom_call.1} parent=55 // pred_region
          %370 = dma.done [#allocation6], 256
        $region68: #{tpu_custom_call.1} parent=55 // pred_fallthru
          _
        // Predicated region
        $region69: #{tpu_custom_call.1} parent=55 // pred_check
          %p371 = pneg %p175
        $region70: #{tpu_custom_call.1} parent=55 // pred_check_branch
          %373 = sbr.rel (%p371) target = $region72
        $region71: #{tpu_custom_call.1} parent=55 // pred_region
          %374 = dma.done [#allocation9], 512
        $region72: #{tpu_custom_call.1} parent=55 // pred_fallthru
          _
        // Predicated region
        $region73: #{tpu_custom_call.1} parent=55 // pred_check
          %p375 = pneg %p196
        $region74: #{tpu_custom_call.1} parent=55 // pred_check_branch
          %377 = sbr.rel (%p375) target = $region76
        $region75: #{tpu_custom_call.1} parent=55 // pred_region
          %378 = dma.done [#allocation9], 256
        $region76: #{tpu_custom_call.1} parent=55 // pred_fallthru
          _
        %s379 = sand.u32 %s36, 1
        %s380 = scalar_lea.sflag [#allocation3], %s379
        %s381 = sand.u32 %s36, 1
        %s382 = smul.addr %s381, 16
        %s383 = scalar_lea.vmem [#allocation2], %s382
        %p384 = pneg %p49
        %p385 = pneg %p46
        %p386 = pneg %p70
        %p387 = pneg %p67
        %p388 = pneg %p91
        %p389 = pneg %p88
        %p390 = pneg %p112
        %p391 = pneg %p109
        %p392 = pneg %p133
        %p393 = pneg %p130
        %p394 = pneg %p154
        %p395 = pneg %p151
        %p396 = pneg %p175
        %p397 = pneg %p172
        %p398 = pneg %p196
        %p399 = pneg %p193
        %p400 = pneg %p217
        %p401 = pneg %p214
        %p402 = pneg %p243
        %p403 = pneg %p240
        %s404 = sand.u32 %s230, 1
        %s405 = scalar_lea.sflag [#allocation4], %s404
        %s406 = sand.u32 %s230, 1
        %s407 = smul.addr %s406, 16
        %s408 = scalar_lea.vmem [#allocation11], %s407
        %s409 = smul.u32 2, %s28
        %s410 = smul.u32 2, %s28
        %v412 = vld [vmem:[%s358] sm:$0xff]
        %v413 = vld [vmem:[%s358 + $0x8] sm:$0xff]
        %vm414 = vcmask 261120
        %v415 = vsel %vm414, %v412, 0.0
        %416 = vadd.xlane.f32.xlu0 %v415
        %v417 = vpop.xlane.xlu0 %416
        %v418 = vsel %vm414, %v413, 0.0
        %419 = vadd.xlane.f32.xlu0 %v418
        %v420 = vpop.xlane.xlu0 %419
        %v421 = vrcp.pop 32.0
        %v422 = vmul.f32 %v417, %v421
        %v423 = vmul.f32 %v420, %v421
        %v424 = vsub.f32 %v412, %v422
        %v425 = vsub.f32 %v413, %v423
        %v426 = vmul.f32 %v424, %v424
        %v427 = vmul.f32 %v425, %v425
        %v428 = vsel %vm414, %v426, 0.0
        %429 = vadd.xlane.f32.xlu0 %v428
        %v430 = vpop.xlane.xlu0 %429
        %v431 = vsel %vm414, %v427, 0.0
        %432 = vadd.xlane.f32.xlu0 %v431
        %v433 = vpop.xlane.xlu0 %432
        %v434 = vmul.f32 %v430, %v421
        %v435 = vmul.f32 %v433, %v421
        %v436 = vadd.f32 %v434, 1e-05
        %v437 = vadd.f32 %v435, 1e-05
        %v438 = vrsqrt.pop %v436
        %v439 = vrsqrt.pop %v437
        %v440 = vmul.f32 %v424, %v438
        %v441 = vmul.f32 %v425, %v439
        %v442 = vld [vmem:[%s2] sm:$0x1]
        %v444 = vlaneseq
        %v445 = vshrl.u32 %v444, 7
        %v446 = vsub.s32 0, %v445
        %v447 = vrot.slane %v442, %v446
        %v449 = vmul.f32 %v440, %v447
        %v450 = vmul.f32 %v441, %v447
        %v451 = vld [vmem:[%s3] sm:$0x1]
        %v453 = vlaneseq
        %v454 = vshrl.u32 %v453, 7
        %v455 = vsub.s32 0, %v454
        %v456 = vrot.slane %v451, %v455
        %v458 = vadd.f32 %v449, %v456
        %v459 = vadd.f32 %v450, %v456
        %v460 = vpack.c.bf16 %v459, %v458
        %v461 = vld [vmem:[#allocation7] sm:$0xf]
        %v462 = vld [vmem:[#allocation7 + $0x4] sm:$0xf]
        %v463 = vld [vmem:[#allocation7 + $0x8] sm:$0xf]
        %v464 = vld [vmem:[#allocation7 + $0xc] sm:$0xf]
        %v465 = vld [vmem:[%s5] sm:$0x1]
        %v467 = vlaneseq
        %v468 = vshrl.u32 %v467, 7
        %v469 = vsub.s32 0, %v468
        %v470 = vrot.slane %v465, %v469
        %v476 = vunpack.c.l.b16 %v461
        %v477 = vunpack.c.l.b16 %v462
        %v478 = vunpack.c.l.b16 %v463
        %v479 = vunpack.c.l.b16 %v464
        %v480 = vpack.c.b16 %v477, %v476
        %v481 = vpack.c.b16 %v479, %v478
        %v485 = vsel %vm414, %v460, 0
        %487 = vmatprep.subr.bf16.mxu0 0
        %488 = vmatpush1.bf16.msra.mxu0 0
        %489 = vmatprep.subr.bf16.mxu0 0
        %490 = vmatpush1.bf16.msra.mxu0 0
        %491 = vmatprep.subr.bf16.mxu0 0
        %492 = vmatpush1.bf16.msra.mxu0 0
        %493 = vmatprep.subr.bf16.mxu0 0
        %494 = vmatpush1.bf16.msra.mxu0 0
        %495 = vmatprep.subr.bf16.mxu0 0
        %496 = vmatpush1.bf16.msra.mxu0 0
        %497 = vmatprep.subr.bf16.mxu0 0
        %498 = vmatpush1.bf16.msra.mxu0 0
        %499 = vmatprep.subr.bf16.mxu0 0
        %500 = vmatpush1.bf16.msra.mxu0 %v481
        %501 = vmatprep.subr.bf16.mxu0 0
        %502 = vmatpush1.bf16.msra.mxu0 %v480
        %503 = vmatprep.subr.bf16.mxu0 0
        %504 = vmatpush2.bf16.msra.mxu0 0
        %505 = vmatprep.subr.bf16.mxu0 0
        %506 = vmatpush2.bf16.msra.mxu0 0
        %507 = vmatprep.subr.bf16.mxu0 0
        %508 = vmatpush2.bf16.msra.mxu0 0
        %509 = vmatprep.subr.bf16.mxu0 0
        %510 = vmatpush2.bf16.msra.mxu0 0
        %511 = vmatprep.subr.bf16.mxu0 0
        %512 = vmatpush2.bf16.msra.mxu0 0
        %513 = vmatprep.subr.bf16.mxu0 0
        %514 = vmatpush2.bf16.msra.mxu0 0
        %515 = vmatprep.subr.bf16.mxu0 0
        %516 = vmatpush2.bf16.msra.mxu0 0
        %517 = vmatprep.subr.bf16.mxu0 0
        %518 = vmatpush2.bf16.msra.mxu0 0
        %519 = vmatprep.mubr.bf16.mxu0 0
        %520 = vmatmul.mubr.bf16.gmra.mxu0 %v485
        %v521 = vpop.f32.mrf.mxu0
        %v522 = vadd.f32 %v470, %v521
        %v523 = vpop.f32.mrf.mxu0
        %v524 = vpop.f32.mrf.mxu0
        %v525 = vadd.f32 %v470, %v524
        %v526 = vpop.f32.mrf.mxu0
        %527 = vdwg.mxu0
        %530 = vrot.lane.b32.xlu0 %v522, 120
        %v531 = vpop.permute.xlu0 %530
        %532 = vrot.lane.b32.xlu0 %v525, 120
        %v533 = vpop.permute.xlu0 %532
        %536 = vrot.lane.b32.xlu0 %v522, 112
        %v537 = vpop.permute.xlu0 %536
        %538 = vrot.lane.b32.xlu0 %v525, 112
        %v539 = vpop.permute.xlu0 %538
        %542 = vrot.lane.b32.xlu0 %v522, 104
        %v543 = vpop.permute.xlu0 %542
        %544 = vrot.lane.b32.xlu0 %v525, 104
        %v545 = vpop.permute.xlu0 %544
        %v548 = vpack.c.bf16 %v522, %v522
        %v549 = vpack.c.bf16 %v525, %v525
        %v550 = vpack.c.bf16 %v531, %v531
        %v551 = vpack.c.bf16 %v533, %v533
        %v552 = vpack.c.bf16 %v537, %v537
        %v553 = vpack.c.bf16 %v539, %v539
        %v554 = vpack.c.bf16 %v543, %v543
        %v555 = vpack.c.bf16 %v545, %v545
        %v556 = vld [vmem:[#allocation8] sm:$0xff]
        %v557 = vld [vmem:[#allocation8 + $0x8] sm:$0xff]
        %v558 = vld [vmem:[#allocation8 + $0x10] sm:$0xff]
        %v559 = vld [vmem:[#allocation8 + $0x18] sm:$0xff]
        %v560 = vld [vmem:[#allocation5] sm:$0xff]
        %v561 = vld [vmem:[#allocation5 + $0x8] sm:$0xff]
        %v562 = vadd.f32 %v556, %v560
        %v563 = vadd.f32 %v556, %v561
        %v564 = vadd.f32 %v557, %v560
        %v565 = vadd.f32 %v557, %v561
        %v566 = vadd.f32 %v558, %v560
        %v567 = vadd.f32 %v558, %v561
        %v568 = vadd.f32 %v559, %v560
        %v569 = vadd.f32 %v559, %v561
        %571 = vrot.lane.b32.xlu0 %v548, 96
        %v572 = vpop.permute.xlu0 %571
        %vm573 = vcmask 64512
        %v575 = vsel %vm573, %v548, 0
        %v578 = vsel %vm573, %v572, 0
        %580 = vmatprep.subr.bf16.mxu0 0
        %581 = vmatpush1.bf16.xpose.msra.mxu0 0
        %582 = vmatprep.subr.bf16.mxu0 0
        %583 = vmatpush1.bf16.xpose.msra.mxu0 0
        %584 = vmatprep.subr.bf16.mxu0 0
        %585 = vmatpush1.bf16.xpose.msra.mxu0 0
        %586 = vmatprep.subr.bf16.mxu0 0
        %587 = vmatpush1.bf16.xpose.msra.mxu0 0
        %588 = vmatprep.subr.bf16.mxu0 0
        %589 = vmatpush1.bf16.xpose.msra.mxu0 0
        %590 = vmatprep.subr.bf16.mxu0 0
        %591 = vmatpush1.bf16.xpose.msra.mxu0 0
        %592 = vmatprep.subr.bf16.mxu0 0
        %593 = vmatpush1.bf16.xpose.msra.mxu0 0
        %594 = vmatprep.subr.bf16.mxu0 0
        %595 = vmatpush1.bf16.xpose.msra.mxu0 %v578
        %596 = vmatprep.subr.bf16.mxu0 0
        %597 = vmatpush2.bf16.xpose.msra.mxu0 0
        %598 = vmatprep.subr.bf16.mxu0 0
        %599 = vmatpush2.bf16.xpose.msra.mxu0 0
        %600 = vmatprep.subr.bf16.mxu0 0
        %601 = vmatpush2.bf16.xpose.msra.mxu0 0
        %602 = vmatprep.subr.bf16.mxu0 0
        %603 = vmatpush2.bf16.xpose.msra.mxu0 0
        %604 = vmatprep.subr.bf16.mxu0 0
        %605 = vmatpush2.bf16.xpose.msra.mxu0 0
        %606 = vmatprep.subr.bf16.mxu0 0
        %607 = vmatpush2.bf16.xpose.msra.mxu0 0
        %608 = vmatprep.subr.bf16.mxu0 0
        %609 = vmatpush2.bf16.xpose.msra.mxu0 0
        %610 = vmatprep.subr.bf16.mxu0 0
        %611 = vmatpush2.bf16.xpose.msra.mxu0 0
        %612 = vmatprep.mubr.bf16.mxu0 0
        %613 = vmatmul.mubr.bf16.gmra.mxu0 %v575
        %v614 = vpop.f32.mrf.mxu0
        %v615 = vadd.f32 %v562, %v614
        %v616 = vpop.f32.mrf.mxu0
        %v617 = vpop.f32.mrf.mxu0
        %v618 = vpop.f32.mrf.mxu0
        %619 = vdwg.mxu0
        %621 = vrot.lane.b32.xlu0 %v549, 96
        %v622 = vpop.permute.xlu0 %621
        %v624 = vsel %vm573, %v549, 0
        %v627 = vsel %vm573, %v622, 0
        %629 = vmatprep.subr.bf16.mxu0 0
        %630 = vmatpush1.bf16.xpose.msra.mxu0 0
        %631 = vmatprep.subr.bf16.mxu0 0
        %632 = vmatpush1.bf16.xpose.msra.mxu0 0
        %633 = vmatprep.subr.bf16.mxu0 0
        %634 = vmatpush1.bf16.xpose.msra.mxu0 0
        %635 = vmatprep.subr.bf16.mxu0 0
        %636 = vmatpush1.bf16.xpose.msra.mxu0 0
        %637 = vmatprep.subr.bf16.mxu0 0
        %638 = vmatpush1.bf16.xpose.msra.mxu0 0
        %639 = vmatprep.subr.bf16.mxu0 0
        %640 = vmatpush1.bf16.xpose.msra.mxu0 0
        %641 = vmatprep.subr.bf16.mxu0 0
        %642 = vmatpush1.bf16.xpose.msra.mxu0 0
        %643 = vmatprep.subr.bf16.mxu0 0
        %644 = vmatpush1.bf16.xpose.msra.mxu0 %v627
        %645 = vmatprep.subr.bf16.mxu0 0
        %646 = vmatpush2.bf16.xpose.msra.mxu0 0
        %647 = vmatprep.subr.bf16.mxu0 0
        %648 = vmatpush2.bf16.xpose.msra.mxu0 0
        %649 = vmatprep.subr.bf16.mxu0 0
        %650 = vmatpush2.bf16.xpose.msra.mxu0 0
        %651 = vmatprep.subr.bf16.mxu0 0
        %652 = vmatpush2.bf16.xpose.msra.mxu0 0
        %653 = vmatprep.subr.bf16.mxu0 0
        %654 = vmatpush2.bf16.xpose.msra.mxu0 0
        %655 = vmatprep.subr.bf16.mxu0 0
        %656 = vmatpush2.bf16.xpose.msra.mxu0 0
        %657 = vmatprep.subr.bf16.mxu0 0
        %658 = vmatpush2.bf16.xpose.msra.mxu0 0
        %659 = vmatprep.subr.bf16.mxu0 0
        %660 = vmatpush2.bf16.xpose.msra.mxu0 0
        %661 = vmatprep.mubr.bf16.mxu0 0
        %662 = vmatmul.mubr.bf16.gmra.mxu0 %v624
        %v663 = vpop.f32.mrf.mxu0
        %v664 = vadd.f32 %v563, %v663
        %v665 = vpop.f32.mrf.mxu0
        %v666 = vpop.f32.mrf.mxu0
        %v667 = vpop.f32.mrf.mxu0
        %668 = vdwg.mxu0
        %670 = vrot.lane.b32.xlu0 %v550, 96
        %v671 = vpop.permute.xlu0 %670
        %v673 = vsel %vm573, %v550, 0
        %v676 = vsel %vm573, %v671, 0
        %678 = vmatprep.subr.bf16.mxu0 0
        %679 = vmatpush1.bf16.xpose.msra.mxu0 0
        %680 = vmatprep.subr.bf16.mxu0 0
        %681 = vmatpush1.bf16.xpose.msra.mxu0 0
        %682 = vmatprep.subr.bf16.mxu0 0
        %683 = vmatpush1.bf16.xpose.msra.mxu0 0
        %684 = vmatprep.subr.bf16.mxu0 0
        %685 = vmatpush1.bf16.xpose.msra.mxu0 0
        %686 = vmatprep.subr.bf16.mxu0 0
        %687 = vmatpush1.bf16.xpose.msra.mxu0 0
        %688 = vmatprep.subr.bf16.mxu0 0
        %689 = vmatpush1.bf16.xpose.msra.mxu0 0
        %690 = vmatprep.subr.bf16.mxu0 0
        %691 = vmatpush1.bf16.xpose.msra.mxu0 0
        %692 = vmatprep.subr.bf16.mxu0 0
        %693 = vmatpush1.bf16.xpose.msra.mxu0 %v676
        %694 = vmatprep.subr.bf16.mxu0 0
        %695 = vmatpush2.bf16.xpose.msra.mxu0 0
        %696 = vmatprep.subr.bf16.mxu0 0
        %697 = vmatpush2.bf16.xpose.msra.mxu0 0
        %698 = vmatprep.subr.bf16.mxu0 0
        %699 = vmatpush2.bf16.xpose.msra.mxu0 0
        %700 = vmatprep.subr.bf16.mxu0 0
        %701 = vmatpush2.bf16.xpose.msra.mxu0 0
        %702 = vmatprep.subr.bf16.mxu0 0
        %703 = vmatpush2.bf16.xpose.msra.mxu0 0
        %704 = vmatprep.subr.bf16.mxu0 0
        %705 = vmatpush2.bf16.xpose.msra.mxu0 0
        %706 = vmatprep.subr.bf16.mxu0 0
        %707 = vmatpush2.bf16.xpose.msra.mxu0 0
        %708 = vmatprep.subr.bf16.mxu0 0
        %709 = vmatpush2.bf16.xpose.msra.mxu0 0
        %710 = vmatprep.mubr.bf16.mxu0 0
        %711 = vmatmul.mubr.bf16.gmra.mxu0 %v673
        %v712 = vpop.f32.mrf.mxu0
        %v713 = vadd.f32 %v564, %v712
        %v714 = vpop.f32.mrf.mxu0
        %v715 = vpop.f32.mrf.mxu0
        %v716 = vpop.f32.mrf.mxu0
        %717 = vdwg.mxu0
        %719 = vrot.lane.b32.xlu0 %v551, 96
        %v720 = vpop.permute.xlu0 %719
        %v722 = vsel %vm573, %v551, 0
        %v725 = vsel %vm573, %v720, 0
        %727 = vmatprep.subr.bf16.mxu0 0
        %728 = vmatpush1.bf16.xpose.msra.mxu0 0
        %729 = vmatprep.subr.bf16.mxu0 0
        %730 = vmatpush1.bf16.xpose.msra.mxu0 0
        %731 = vmatprep.subr.bf16.mxu0 0
        %732 = vmatpush1.bf16.xpose.msra.mxu0 0
        %733 = vmatprep.subr.bf16.mxu0 0
        %734 = vmatpush1.bf16.xpose.msra.mxu0 0
        %735 = vmatprep.subr.bf16.mxu0 0
        %736 = vmatpush1.bf16.xpose.msra.mxu0 0
        %737 = vmatprep.subr.bf16.mxu0 0
        %738 = vmatpush1.bf16.xpose.msra.mxu0 0
        %739 = vmatprep.subr.bf16.mxu0 0
        %740 = vmatpush1.bf16.xpose.msra.mxu0 0
        %741 = vmatprep.subr.bf16.mxu0 0
        %742 = vmatpush1.bf16.xpose.msra.mxu0 %v725
        %743 = vmatprep.subr.bf16.mxu0 0
        %744 = vmatpush2.bf16.xpose.msra.mxu0 0
        %745 = vmatprep.subr.bf16.mxu0 0
        %746 = vmatpush2.bf16.xpose.msra.mxu0 0
        %747 = vmatprep.subr.bf16.mxu0 0
        %748 = vmatpush2.bf16.xpose.msra.mxu0 0
        %749 = vmatprep.subr.bf16.mxu0 0
        %750 = vmatpush2.bf16.xpose.msra.mxu0 0
        %751 = vmatprep.subr.bf16.mxu0 0
        %752 = vmatpush2.bf16.xpose.msra.mxu0 0
        %753 = vmatprep.subr.bf16.mxu0 0
        %754 = vmatpush2.bf16.xpose.msra.mxu0 0
        %755 = vmatprep.subr.bf16.mxu0 0
        %756 = vmatpush2.bf16.xpose.msra.mxu0 0
        %757 = vmatprep.subr.bf16.mxu0 0
        %758 = vmatpush2.bf16.xpose.msra.mxu0 0
        %759 = vmatprep.mubr.bf16.mxu0 0
        %760 = vmatmul.mubr.bf16.gmra.mxu0 %v722
        %v761 = vpop.f32.mrf.mxu0
        %v762 = vadd.f32 %v565, %v761
        %v763 = vpop.f32.mrf.mxu0
        %v764 = vpop.f32.mrf.mxu0
        %v765 = vpop.f32.mrf.mxu0
        %766 = vdwg.mxu0
        %768 = vrot.lane.b32.xlu0 %v552, 96
        %v769 = vpop.permute.xlu0 %768
        %v771 = vsel %vm573, %v552, 0
        %v774 = vsel %vm573, %v769, 0
        %776 = vmatprep.subr.bf16.mxu0 0
        %777 = vmatpush1.bf16.xpose.msra.mxu0 0
        %778 = vmatprep.subr.bf16.mxu0 0
        %779 = vmatpush1.bf16.xpose.msra.mxu0 0
        %780 = vmatprep.subr.bf16.mxu0 0
        %781 = vmatpush1.bf16.xpose.msra.mxu0 0
        %782 = vmatprep.subr.bf16.mxu0 0
        %783 = vmatpush1.bf16.xpose.msra.mxu0 0
        %784 = vmatprep.subr.bf16.mxu0 0
        %785 = vmatpush1.bf16.xpose.msra.mxu0 0
        %786 = vmatprep.subr.bf16.mxu0 0
        %787 = vmatpush1.bf16.xpose.msra.mxu0 0
        %788 = vmatprep.subr.bf16.mxu0 0
        %789 = vmatpush1.bf16.xpose.msra.mxu0 0
        %790 = vmatprep.subr.bf16.mxu0 0
        %791 = vmatpush1.bf16.xpose.msra.mxu0 %v774
        %792 = vmatprep.subr.bf16.mxu0 0
        %793 = vmatpush2.bf16.xpose.msra.mxu0 0
        %794 = vmatprep.subr.bf16.mxu0 0
        %795 = vmatpush2.bf16.xpose.msra.mxu0 0
        %796 = vmatprep.subr.bf16.mxu0 0
        %797 = vmatpush2.bf16.xpose.msra.mxu0 0
        %798 = vmatprep.subr.bf16.mxu0 0
        %799 = vmatpush2.bf16.xpose.msra.mxu0 0
        %800 = vmatprep.subr.bf16.mxu0 0
        %801 = vmatpush2.bf16.xpose.msra.mxu0 0
        %802 = vmatprep.subr.bf16.mxu0 0
        %803 = vmatpush2.bf16.xpose.msra.mxu0 0
        %804 = vmatprep.subr.bf16.mxu0 0
        %805 = vmatpush2.bf16.xpose.msra.mxu0 0
        %806 = vmatprep.subr.bf16.mxu0 0
        %807 = vmatpush2.bf16.xpose.msra.mxu0 0
        %808 = vmatprep.mubr.bf16.mxu0 0
        %809 = vmatmul.mubr.bf16.gmra.mxu0 %v771
        %v810 = vpop.f32.mrf.mxu0
        %v811 = vadd.f32 %v566, %v810
        %v812 = vpop.f32.mrf.mxu0
        %v813 = vpop.f32.mrf.mxu0
        %v814 = vpop.f32.mrf.mxu0
        %815 = vdwg.mxu0
        %817 = vrot.lane.b32.xlu0 %v553, 96
        %v818 = vpop.permute.xlu0 %817
        %v820 = vsel %vm573, %v553, 0
        %v823 = vsel %vm573, %v818, 0
        %825 = vmatprep.subr.bf16.mxu0 0
        %826 = vmatpush1.bf16.xpose.msra.mxu0 0
        %827 = vmatprep.subr.bf16.mxu0 0
        %828 = vmatpush1.bf16.xpose.msra.mxu0 0
        %829 = vmatprep.subr.bf16.mxu0 0
        %830 = vmatpush1.bf16.xpose.msra.mxu0 0
        %831 = vmatprep.subr.bf16.mxu0 0
        %832 = vmatpush1.bf16.xpose.msra.mxu0 0
        %833 = vmatprep.subr.bf16.mxu0 0
        %834 = vmatpush1.bf16.xpose.msra.mxu0 0
        %835 = vmatprep.subr.bf16.mxu0 0
        %836 = vmatpush1.bf16.xpose.msra.mxu0 0
        %837 = vmatprep.subr.bf16.mxu0 0
        %838 = vmatpush1.bf16.xpose.msra.mxu0 0
        %839 = vmatprep.subr.bf16.mxu0 0
        %840 = vmatpush1.bf16.xpose.msra.mxu0 %v823
        %841 = vmatprep.subr.bf16.mxu0 0
        %842 = vmatpush2.bf16.xpose.msra.mxu0 0
        %843 = vmatprep.subr.bf16.mxu0 0
        %844 = vmatpush2.bf16.xpose.msra.mxu0 0
        %845 = vmatprep.subr.bf16.mxu0 0
        %846 = vmatpush2.bf16.xpose.msra.mxu0 0
        %847 = vmatprep.subr.bf16.mxu0 0
        %848 = vmatpush2.bf16.xpose.msra.mxu0 0
        %849 = vmatprep.subr.bf16.mxu0 0
        %850 = vmatpush2.bf16.xpose.msra.mxu0 0
        %851 = vmatprep.subr.bf16.mxu0 0
        %852 = vmatpush2.bf16.xpose.msra.mxu0 0
        %853 = vmatprep.subr.bf16.mxu0 0
        %854 = vmatpush2.bf16.xpose.msra.mxu0 0
        %855 = vmatprep.subr.bf16.mxu0 0
        %856 = vmatpush2.bf16.xpose.msra.mxu0 0
        %857 = vmatprep.mubr.bf16.mxu0 0
        %858 = vmatmul.mubr.bf16.gmra.mxu0 %v820
        %v859 = vpop.f32.mrf.mxu0
        %v860 = vadd.f32 %v567, %v859
        %v861 = vpop.f32.mrf.mxu0
        %v862 = vpop.f32.mrf.mxu0
        %v863 = vpop.f32.mrf.mxu0
        %864 = vdwg.mxu0
        %866 = vrot.lane.b32.xlu0 %v554, 96
        %v867 = vpop.permute.xlu0 %866
        %v869 = vsel %vm573, %v554, 0
        %v872 = vsel %vm573, %v867, 0
        %874 = vmatprep.subr.bf16.mxu0 0
        %875 = vmatpush1.bf16.xpose.msra.mxu0 0
        %876 = vmatprep.subr.bf16.mxu0 0
        %877 = vmatpush1.bf16.xpose.msra.mxu0 0
        %878 = vmatprep.subr.bf16.mxu0 0
        %879 = vmatpush1.bf16.xpose.msra.mxu0 0
        %880 = vmatprep.subr.bf16.mxu0 0
        %881 = vmatpush1.bf16.xpose.msra.mxu0 0
        %882 = vmatprep.subr.bf16.mxu0 0
        %883 = vmatpush1.bf16.xpose.msra.mxu0 0
        %884 = vmatprep.subr.bf16.mxu0 0
        %885 = vmatpush1.bf16.xpose.msra.mxu0 0
        %886 = vmatprep.subr.bf16.mxu0 0
        %887 = vmatpush1.bf16.xpose.msra.mxu0 0
        %888 = vmatprep.subr.bf16.mxu0 0
        %889 = vmatpush1.bf16.xpose.msra.mxu0 %v872
        %890 = vmatprep.subr.bf16.mxu0 0
        %891 = vmatpush2.bf16.xpose.msra.mxu0 0
        %892 = vmatprep.subr.bf16.mxu0 0
        %893 = vmatpush2.bf16.xpose.msra.mxu0 0
        %894 = vmatprep.subr.bf16.mxu0 0
        %895 = vmatpush2.bf16.xpose.msra.mxu0 0
        %896 = vmatprep.subr.bf16.mxu0 0
        %897 = vmatpush2.bf16.xpose.msra.mxu0 0
        %898 = vmatprep.subr.bf16.mxu0 0
        %899 = vmatpush2.bf16.xpose.msra.mxu0 0
        %900 = vmatprep.subr.bf16.mxu0 0
        %901 = vmatpush2.bf16.xpose.msra.mxu0 0
        %902 = vmatprep.subr.bf16.mxu0 0
        %903 = vmatpush2.bf16.xpose.msra.mxu0 0
        %904 = vmatprep.subr.bf16.mxu0 0
        %905 = vmatpush2.bf16.xpose.msra.mxu0 0
        %906 = vmatprep.mubr.bf16.mxu0 0
        %907 = vmatmul.mubr.bf16.gmra.mxu0 %v869
        %v908 = vpop.f32.mrf.mxu0
        %v909 = vadd.f32 %v568, %v908
        %v910 = vpop.f32.mrf.mxu0
        %v911 = vpop.f32.mrf.mxu0
        %v912 = vpop.f32.mrf.mxu0
        %913 = vdwg.mxu0
        %915 = vrot.lane.b32.xlu0 %v555, 96
        %v916 = vpop.permute.xlu0 %915
        %v918 = vsel %vm573, %v555, 0
        %v921 = vsel %vm573, %v916, 0
        %923 = vmatprep.subr.bf16.mxu0 0
        %924 = vmatpush1.bf16.xpose.msra.mxu0 0
        %925 = vmatprep.subr.bf16.mxu0 0
        %926 = vmatpush1.bf16.xpose.msra.mxu0 0
        %927 = vmatprep.subr.bf16.mxu0 0
        %928 = vmatpush1.bf16.xpose.msra.mxu0 0
        %929 = vmatprep.subr.bf16.mxu0 0
        %930 = vmatpush1.bf16.xpose.msra.mxu0 0
        %931 = vmatprep.subr.bf16.mxu0 0
        %932 = vmatpush1.bf16.xpose.msra.mxu0 0
        %933 = vmatprep.subr.bf16.mxu0 0
        %934 = vmatpush1.bf16.xpose.msra.mxu0 0
        %935 = vmatprep.subr.bf16.mxu0 0
        %936 = vmatpush1.bf16.xpose.msra.mxu0 0
        %937 = vmatprep.subr.bf16.mxu0 0
        %938 = vmatpush1.bf16.xpose.msra.mxu0 %v921
        %939 = vmatprep.subr.bf16.mxu0 0
        %940 = vmatpush2.bf16.xpose.msra.mxu0 0
        %941 = vmatprep.subr.bf16.mxu0 0
        %942 = vmatpush2.bf16.xpose.msra.mxu0 0
        %943 = vmatprep.subr.bf16.mxu0 0
        %944 = vmatpush2.bf16.xpose.msra.mxu0 0
        %945 = vmatprep.subr.bf16.mxu0 0
        %946 = vmatpush2.bf16.xpose.msra.mxu0 0
        %947 = vmatprep.subr.bf16.mxu0 0
        %948 = vmatpush2.bf16.xpose.msra.mxu0 0
        %949 = vmatprep.subr.bf16.mxu0 0
        %950 = vmatpush2.bf16.xpose.msra.mxu0 0
        %951 = vmatprep.subr.bf16.mxu0 0
        %952 = vmatpush2.bf16.xpose.msra.mxu0 0
        %953 = vmatprep.subr.bf16.mxu0 0
        %954 = vmatpush2.bf16.xpose.msra.mxu0 0
        %955 = vmatprep.mubr.bf16.mxu0 0
        %956 = vmatmul.mubr.bf16.gmra.mxu0 %v918
        %v957 = vpop.f32.mrf.mxu0
        %v958 = vadd.f32 %v569, %v957
        %v959 = vpop.f32.mrf.mxu0
        %v960 = vpop.f32.mrf.mxu0
        %v961 = vpop.f32.mrf.mxu0
        %962 = vdwg.mxu0
        %v963 = vsel %vm573, %v615, -inf
        %964 = vmax.xlane.f32.xlu0 %v963
        %v965 = vpop.xlane.xlu0 %964
        %v966 = vsel %vm573, %v664, -inf
        %967 = vmax.xlane.f32.xlu0 %v966
        %v968 = vpop.xlane.xlu0 %967
        %v969 = vsel %vm573, %v713, -inf
        %970 = vmax.xlane.f32.xlu0 %v969
        %v971 = vpop.xlane.xlu0 %970
        %v972 = vsel %vm573, %v762, -inf
        %973 = vmax.xlane.f32.xlu0 %v972
        %v974 = vpop.xlane.xlu0 %973
        %v975 = vsel %vm573, %v811, -inf
        %976 = vmax.xlane.f32.xlu0 %v975
        %v977 = vpop.xlane.xlu0 %976
        %v978 = vsel %vm573, %v860, -inf
        %979 = vmax.xlane.f32.xlu0 %v978
        %v980 = vpop.xlane.xlu0 %979
        %v981 = vsel %vm573, %v909, -inf
        %982 = vmax.xlane.f32.xlu0 %v981
        %v983 = vpop.xlane.xlu0 %982
        %v984 = vsel %vm573, %v958, -inf
        %985 = vmax.xlane.f32.xlu0 %v984
        %v986 = vpop.xlane.xlu0 %985
        %v987 = vsub.f32 %v615, %v965
        %v988 = vsub.f32 %v664, %v968
        %v989 = vsub.f32 %v713, %v971
        %v990 = vsub.f32 %v762, %v974
        %v991 = vsub.f32 %v811, %v977
        %v992 = vsub.f32 %v860, %v980
        %v993 = vsub.f32 %v909, %v983
        %v994 = vsub.f32 %v958, %v986
        %v995 = vmul.f32 %v987, 1.442695
        %v996 = vpow.pop %v995
        %v997 = vmul.f32 %v988, 1.442695
        %v998 = vpow.pop %v997
        %v999 = vmul.f32 %v989, 1.442695
        %v1000 = vpow.pop %v999
        %v1001 = vmul.f32 %v990, 1.442695
        %v1002 = vpow.pop %v1001
        %v1003 = vmul.f32 %v991, 1.442695
        %v1004 = vpow.pop %v1003
        %v1005 = vmul.f32 %v992, 1.442695
        %v1006 = vpow.pop %v1005
        %v1007 = vmul.f32 %v993, 1.442695
        %v1008 = vpow.pop %v1007
        %v1009 = vmul.f32 %v994, 1.442695
        %v1010 = vpow.pop %v1009
        %v1011 = vsel %vm573, %v996, 0.0
        %1012 = vadd.xlane.f32.xlu0 %v1011
        %v1013 = vpop.xlane.xlu0 %1012
        %v1014 = vsel %vm573, %v998, 0.0
        %1015 = vadd.xlane.f32.xlu0 %v1014
        %v1016 = vpop.xlane.xlu0 %1015
        %v1017 = vsel %vm573, %v1000, 0.0
        %1018 = vadd.xlane.f32.xlu0 %v1017
        %v1019 = vpop.xlane.xlu0 %1018
        %v1020 = vsel %vm573, %v1002, 0.0
        %1021 = vadd.xlane.f32.xlu0 %v1020
        %v1022 = vpop.xlane.xlu0 %1021
        %v1023 = vsel %vm573, %v1004, 0.0
        %1024 = vadd.xlane.f32.xlu0 %v1023
        %v1025 = vpop.xlane.xlu0 %1024
        %v1026 = vsel %vm573, %v1006, 0.0
        %1027 = vadd.xlane.f32.xlu0 %v1026
        %v1028 = vpop.xlane.xlu0 %1027
        %v1029 = vsel %vm573, %v1008, 0.0
        %1030 = vadd.xlane.f32.xlu0 %v1029
        %v1031 = vpop.xlane.xlu0 %1030
        %v1032 = vsel %vm573, %v1010, 0.0
        %1033 = vadd.xlane.f32.xlu0 %v1032
        %v1034 = vpop.xlane.xlu0 %1033
        %v1035 = vrcp.pop %v1013
        %v1036 = vrcp.pop %v1016
        %v1037 = vrcp.pop %v1019
        %v1038 = vrcp.pop %v1022
        %v1039 = vrcp.pop %v1025
        %v1040 = vrcp.pop %v1028
        %v1041 = vrcp.pop %v1031
        %v1042 = vrcp.pop %v1034
        %v1043 = vmul.f32 %v996, %v1035
        %v1044 = vmul.f32 %v998, %v1036
        %v1045 = vmul.f32 %v1000, %v1037
        %v1046 = vmul.f32 %v1002, %v1038
        %v1047 = vmul.f32 %v1004, %v1039
        %v1048 = vmul.f32 %v1006, %v1040
        %v1049 = vmul.f32 %v1008, %v1041
        %v1050 = vmul.f32 %v1010, %v1042
        %v1051 = vpack.c.bf16 %v1043, %v1043
        %v1052 = vpack.c.bf16 %v1044, %v1044
        %v1053 = vpack.c.bf16 %v1045, %v1045
        %v1054 = vpack.c.bf16 %v1046, %v1046
        %v1055 = vpack.c.bf16 %v1047, %v1047
        %v1056 = vpack.c.bf16 %v1048, %v1048
        %v1057 = vpack.c.bf16 %v1049, %v1049
        %v1058 = vpack.c.bf16 %v1050, %v1050
        %1059 = vrot.lane.b32.xlu0 %v548, 64
        %v1060 = vpop.permute.xlu0 %1059
        %v1062 = vsel %vm573, %v1051, 0
        %vm1064 = vcmask 1043456
        %v1066 = vsel %vm1064, %v1060, 0
        %1068 = vmatprep.subr.bf16.mxu0 0
        %1069 = vmatpush1.bf16.msra.mxu0 0
        %1070 = vmatprep.subr.bf16.mxu0 0
        %1071 = vmatpush1.bf16.msra.mxu0 0
        %1072 = vmatprep.subr.bf16.mxu0 0
        %1073 = vmatpush1.bf16.msra.mxu0 0
        %1074 = vmatprep.subr.bf16.mxu0 0
        %1075 = vmatpush1.bf16.msra.mxu0 0
        %1076 = vmatprep.subr.bf16.mxu0 0
        %1077 = vmatpush1.bf16.msra.mxu0 0
        %1078 = vmatprep.subr.bf16.mxu0 0
        %1079 = vmatpush1.bf16.msra.mxu0 0
        %1080 = vmatprep.subr.bf16.mxu0 0
        %1081 = vmatpush1.bf16.msra.mxu0 0
        %1082 = vmatprep.subr.bf16.mxu0 0
        %1083 = vmatpush1.bf16.msra.mxu0 %v1066
        %1084 = vmatprep.subr.bf16.mxu0 0
        %1085 = vmatpush2.bf16.msra.mxu0 0
        %1086 = vmatprep.subr.bf16.mxu0 0
        %1087 = vmatpush2.bf16.msra.mxu0 0
        %1088 = vmatprep.subr.bf16.mxu0 0
        %1089 = vmatpush2.bf16.msra.mxu0 0
        %1090 = vmatprep.subr.bf16.mxu0 0
        %1091 = vmatpush2.bf16.msra.mxu0 0
        %1092 = vmatprep.subr.bf16.mxu0 0
        %1093 = vmatpush2.bf16.msra.mxu0 0
        %1094 = vmatprep.subr.bf16.mxu0 0
        %1095 = vmatpush2.bf16.msra.mxu0 0
        %1096 = vmatprep.subr.bf16.mxu0 0
        %1097 = vmatpush2.bf16.msra.mxu0 0
        %1098 = vmatprep.subr.bf16.mxu0 0
        %1099 = vmatpush2.bf16.msra.mxu0 0
        %1100 = vmatprep.mubr.bf16.mxu0 0
        %1101 = vmatmul.mubr.bf16.gmra.mxu0 %v1062
        %v1102 = vpop.f32.mrf.mxu0
        %v1103 = vadd.f32 0.0, %v1102
        %v1104 = vpop.f32.mrf.mxu0
        %v1105 = vpop.f32.mrf.mxu0
        %v1106 = vpop.f32.mrf.mxu0
        %1107 = vdwg.mxu0
        %1108 = vrot.lane.b32.xlu0 %v549, 64
        %v1109 = vpop.permute.xlu0 %1108
        %v1111 = vsel %vm573, %v1052, 0
        %v1114 = vsel %vm1064, %v1109, 0
        %1116 = vmatprep.subr.bf16.mxu0 0
        %1117 = vmatpush1.bf16.msra.mxu0 0
        %1118 = vmatprep.subr.bf16.mxu0 0
        %1119 = vmatpush1.bf16.msra.mxu0 0
        %1120 = vmatprep.subr.bf16.mxu0 0
        %1121 = vmatpush1.bf16.msra.mxu0 0
        %1122 = vmatprep.subr.bf16.mxu0 0
        %1123 = vmatpush1.bf16.msra.mxu0 0
        %1124 = vmatprep.subr.bf16.mxu0 0
        %1125 = vmatpush1.bf16.msra.mxu0 0
        %1126 = vmatprep.subr.bf16.mxu0 0
        %1127 = vmatpush1.bf16.msra.mxu0 0
        %1128 = vmatprep.subr.bf16.mxu0 0
        %1129 = vmatpush1.bf16.msra.mxu0 0
        %1130 = vmatprep.subr.bf16.mxu0 0
        %1131 = vmatpush1.bf16.msra.mxu0 %v1114
        %1132 = vmatprep.subr.bf16.mxu0 0
        %1133 = vmatpush2.bf16.msra.mxu0 0
        %1134 = vmatprep.subr.bf16.mxu0 0
        %1135 = vmatpush2.bf16.msra.mxu0 0
        %1136 = vmatprep.subr.bf16.mxu0 0
        %1137 = vmatpush2.bf16.msra.mxu0 0
        %1138 = vmatprep.subr.bf16.mxu0 0
        %1139 = vmatpush2.bf16.msra.mxu0 0
        %1140 = vmatprep.subr.bf16.mxu0 0
        %1141 = vmatpush2.bf16.msra.mxu0 0
        %1142 = vmatprep.subr.bf16.mxu0 0
        %1143 = vmatpush2.bf16.msra.mxu0 0
        %1144 = vmatprep.subr.bf16.mxu0 0
        %1145 = vmatpush2.bf16.msra.mxu0 0
        %1146 = vmatprep.subr.bf16.mxu0 0
        %1147 = vmatpush2.bf16.msra.mxu0 0
        %1148 = vmatprep.mubr.bf16.mxu0 0
        %1149 = vmatmul.mubr.bf16.gmra.mxu0 %v1111
        %v1150 = vpop.f32.mrf.mxu0
        %v1151 = vadd.f32 0.0, %v1150
        %v1152 = vpop.f32.mrf.mxu0
        %v1153 = vpop.f32.mrf.mxu0
        %v1154 = vpop.f32.mrf.mxu0
        %1155 = vdwg.mxu0
        %1156 = vrot.lane.b32.xlu0 %v550, 64
        %v1157 = vpop.permute.xlu0 %1156
        %v1159 = vsel %vm573, %v1053, 0
        %v1162 = vsel %vm1064, %v1157, 0
        %1164 = vmatprep.subr.bf16.mxu0 0
        %1165 = vmatpush1.bf16.msra.mxu0 0
        %1166 = vmatprep.subr.bf16.mxu0 0
        %1167 = vmatpush1.bf16.msra.mxu0 0
        %1168 = vmatprep.subr.bf16.mxu0 0
        %1169 = vmatpush1.bf16.msra.mxu0 0
        %1170 = vmatprep.subr.bf16.mxu0 0
        %1171 = vmatpush1.bf16.msra.mxu0 0
        %1172 = vmatprep.subr.bf16.mxu0 0
        %1173 = vmatpush1.bf16.msra.mxu0 0
        %1174 = vmatprep.subr.bf16.mxu0 0
        %1175 = vmatpush1.bf16.msra.mxu0 0
        %1176 = vmatprep.subr.bf16.mxu0 0
        %1177 = vmatpush1.bf16.msra.mxu0 0
        %1178 = vmatprep.subr.bf16.mxu0 0
        %1179 = vmatpush1.bf16.msra.mxu0 %v1162
        %1180 = vmatprep.subr.bf16.mxu0 0
        %1181 = vmatpush2.bf16.msra.mxu0 0
        %1182 = vmatprep.subr.bf16.mxu0 0
        %1183 = vmatpush2.bf16.msra.mxu0 0
        %1184 = vmatprep.subr.bf16.mxu0 0
        %1185 = vmatpush2.bf16.msra.mxu0 0
        %1186 = vmatprep.subr.bf16.mxu0 0
        %1187 = vmatpush2.bf16.msra.mxu0 0
        %1188 = vmatprep.subr.bf16.mxu0 0
        %1189 = vmatpush2.bf16.msra.mxu0 0
        %1190 = vmatprep.subr.bf16.mxu0 0
        %1191 = vmatpush2.bf16.msra.mxu0 0
        %1192 = vmatprep.subr.bf16.mxu0 0
        %1193 = vmatpush2.bf16.msra.mxu0 0
        %1194 = vmatprep.subr.bf16.mxu0 0
        %1195 = vmatpush2.bf16.msra.mxu0 0
        %1196 = vmatprep.mubr.bf16.mxu0 0
        %1197 = vmatmul.mubr.bf16.gmra.mxu0 %v1159
        %v1198 = vpop.f32.mrf.mxu0
        %v1199 = vadd.f32 0.0, %v1198
        %v1200 = vpop.f32.mrf.mxu0
        %v1201 = vpop.f32.mrf.mxu0
        %v1202 = vpop.f32.mrf.mxu0
        %1203 = vdwg.mxu0
        %1204 = vrot.lane.b32.xlu0 %v551, 64
        %v1205 = vpop.permute.xlu0 %1204
        %v1207 = vsel %vm573, %v1054, 0
        %v1210 = vsel %vm1064, %v1205, 0
        %1212 = vmatprep.subr.bf16.mxu0 0
        %1213 = vmatpush1.bf16.msra.mxu0 0
        %1214 = vmatprep.subr.bf16.mxu0 0
        %1215 = vmatpush1.bf16.msra.mxu0 0
        %1216 = vmatprep.subr.bf16.mxu0 0
        %1217 = vmatpush1.bf16.msra.mxu0 0
        %1218 = vmatprep.subr.bf16.mxu0 0
        %1219 = vmatpush1.bf16.msra.mxu0 0
        %1220 = vmatprep.subr.bf16.mxu0 0
        %1221 = vmatpush1.bf16.msra.mxu0 0
        %1222 = vmatprep.subr.bf16.mxu0 0
        %1223 = vmatpush1.bf16.msra.mxu0 0
        %1224 = vmatprep.subr.bf16.mxu0 0
        %1225 = vmatpush1.bf16.msra.mxu0 0
        %1226 = vmatprep.subr.bf16.mxu0 0
        %1227 = vmatpush1.bf16.msra.mxu0 %v1210
        %1228 = vmatprep.subr.bf16.mxu0 0
        %1229 = vmatpush2.bf16.msra.mxu0 0
        %1230 = vmatprep.subr.bf16.mxu0 0
        %1231 = vmatpush2.bf16.msra.mxu0 0
        %1232 = vmatprep.subr.bf16.mxu0 0
        %1233 = vmatpush2.bf16.msra.mxu0 0
        %1234 = vmatprep.subr.bf16.mxu0 0
        %1235 = vmatpush2.bf16.msra.mxu0 0
        %1236 = vmatprep.subr.bf16.mxu0 0
        %1237 = vmatpush2.bf16.msra.mxu0 0
        %1238 = vmatprep.subr.bf16.mxu0 0
        %1239 = vmatpush2.bf16.msra.mxu0 0
        %1240 = vmatprep.subr.bf16.mxu0 0
        %1241 = vmatpush2.bf16.msra.mxu0 0
        %1242 = vmatprep.subr.bf16.mxu0 0
        %1243 = vmatpush2.bf16.msra.mxu0 0
        %1244 = vmatprep.mubr.bf16.mxu0 0
        %1245 = vmatmul.mubr.bf16.gmra.mxu0 %v1207
        %v1246 = vpop.f32.mrf.mxu0
        %v1247 = vadd.f32 0.0, %v1246
        %v1248 = vpop.f32.mrf.mxu0
        %v1249 = vpop.f32.mrf.mxu0
        %v1250 = vpop.f32.mrf.mxu0
        %1251 = vdwg.mxu0
        %1252 = vrot.lane.b32.xlu0 %v552, 64
        %v1253 = vpop.permute.xlu0 %1252
        %v1255 = vsel %vm573, %v1055, 0
        %v1258 = vsel %vm1064, %v1253, 0
        %1260 = vmatprep.subr.bf16.mxu0 0
        %1261 = vmatpush1.bf16.msra.mxu0 0
        %1262 = vmatprep.subr.bf16.mxu0 0
        %1263 = vmatpush1.bf16.msra.mxu0 0
        %1264 = vmatprep.subr.bf16.mxu0 0
        %1265 = vmatpush1.bf16.msra.mxu0 0
        %1266 = vmatprep.subr.bf16.mxu0 0
        %1267 = vmatpush1.bf16.msra.mxu0 0
        %1268 = vmatprep.subr.bf16.mxu0 0
        %1269 = vmatpush1.bf16.msra.mxu0 0
        %1270 = vmatprep.subr.bf16.mxu0 0
        %1271 = vmatpush1.bf16.msra.mxu0 0
        %1272 = vmatprep.subr.bf16.mxu0 0
        %1273 = vmatpush1.bf16.msra.mxu0 0
        %1274 = vmatprep.subr.bf16.mxu0 0
        %1275 = vmatpush1.bf16.msra.mxu0 %v1258
        %1276 = vmatprep.subr.bf16.mxu0 0
        %1277 = vmatpush2.bf16.msra.mxu0 0
        %1278 = vmatprep.subr.bf16.mxu0 0
        %1279 = vmatpush2.bf16.msra.mxu0 0
        %1280 = vmatprep.subr.bf16.mxu0 0
        %1281 = vmatpush2.bf16.msra.mxu0 0
        %1282 = vmatprep.subr.bf16.mxu0 0
        %1283 = vmatpush2.bf16.msra.mxu0 0
        %1284 = vmatprep.subr.bf16.mxu0 0
        %1285 = vmatpush2.bf16.msra.mxu0 0
        %1286 = vmatprep.subr.bf16.mxu0 0
        %1287 = vmatpush2.bf16.msra.mxu0 0
        %1288 = vmatprep.subr.bf16.mxu0 0
        %1289 = vmatpush2.bf16.msra.mxu0 0
        %1290 = vmatprep.subr.bf16.mxu0 0
        %1291 = vmatpush2.bf16.msra.mxu0 0
        %1292 = vmatprep.mubr.bf16.mxu0 0
        %1293 = vmatmul.mubr.bf16.gmra.mxu0 %v1255
        %v1294 = vpop.f32.mrf.mxu0
        %v1295 = vadd.f32 0.0, %v1294
        %v1296 = vpop.f32.mrf.mxu0
        %v1297 = vpop.f32.mrf.mxu0
        %v1298 = vpop.f32.mrf.mxu0
        %1299 = vdwg.mxu0
        %1300 = vrot.lane.b32.xlu0 %v553, 64
        %v1301 = vpop.permute.xlu0 %1300
        %v1303 = vsel %vm573, %v1056, 0
        %v1306 = vsel %vm1064, %v1301, 0
        %1308 = vmatprep.subr.bf16.mxu0 0
        %1309 = vmatpush1.bf16.msra.mxu0 0
        %1310 = vmatprep.subr.bf16.mxu0 0
        %1311 = vmatpush1.bf16.msra.mxu0 0
        %1312 = vmatprep.subr.bf16.mxu0 0
        %1313 = vmatpush1.bf16.msra.mxu0 0
        %1314 = vmatprep.subr.bf16.mxu0 0
        %1315 = vmatpush1.bf16.msra.mxu0 0
        %1316 = vmatprep.subr.bf16.mxu0 0
        %1317 = vmatpush1.bf16.msra.mxu0 0
        %1318 = vmatprep.subr.bf16.mxu0 0
        %1319 = vmatpush1.bf16.msra.mxu0 0
        %1320 = vmatprep.subr.bf16.mxu0 0
        %1321 = vmatpush1.bf16.msra.mxu0 0
        %1322 = vmatprep.subr.bf16.mxu0 0
        %1323 = vmatpush1.bf16.msra.mxu0 %v1306
        %1324 = vmatprep.subr.bf16.mxu0 0
        %1325 = vmatpush2.bf16.msra.mxu0 0
        %1326 = vmatprep.subr.bf16.mxu0 0
        %1327 = vmatpush2.bf16.msra.mxu0 0
        %1328 = vmatprep.subr.bf16.mxu0 0
        %1329 = vmatpush2.bf16.msra.mxu0 0
        %1330 = vmatprep.subr.bf16.mxu0 0
        %1331 = vmatpush2.bf16.msra.mxu0 0
        %1332 = vmatprep.subr.bf16.mxu0 0
        %1333 = vmatpush2.bf16.msra.mxu0 0
        %1334 = vmatprep.subr.bf16.mxu0 0
        %1335 = vmatpush2.bf16.msra.mxu0 0
        %1336 = vmatprep.subr.bf16.mxu0 0
        %1337 = vmatpush2.bf16.msra.mxu0 0
        %1338 = vmatprep.subr.bf16.mxu0 0
        %1339 = vmatpush2.bf16.msra.mxu0 0
        %1340 = vmatprep.mubr.bf16.mxu0 0
        %1341 = vmatmul.mubr.bf16.gmra.mxu0 %v1303
        %v1342 = vpop.f32.mrf.mxu0
        %v1343 = vadd.f32 0.0, %v1342
        %v1344 = vpop.f32.mrf.mxu0
        %v1345 = vpop.f32.mrf.mxu0
        %v1346 = vpop.f32.mrf.mxu0
        %1347 = vdwg.mxu0
        %1348 = vrot.lane.b32.xlu0 %v554, 64
        %v1349 = vpop.permute.xlu0 %1348
        %v1351 = vsel %vm573, %v1057, 0
        %v1354 = vsel %vm1064, %v1349, 0
        %1356 = vmatprep.subr.bf16.mxu0 0
        %1357 = vmatpush1.bf16.msra.mxu0 0
        %1358 = vmatprep.subr.bf16.mxu0 0
        %1359 = vmatpush1.bf16.msra.mxu0 0
        %1360 = vmatprep.subr.bf16.mxu0 0
        %1361 = vmatpush1.bf16.msra.mxu0 0
        %1362 = vmatprep.subr.bf16.mxu0 0
        %1363 = vmatpush1.bf16.msra.mxu0 0
        %1364 = vmatprep.subr.bf16.mxu0 0
        %1365 = vmatpush1.bf16.msra.mxu0 0
        %1366 = vmatprep.subr.bf16.mxu0 0
        %1367 = vmatpush1.bf16.msra.mxu0 0
        %1368 = vmatprep.subr.bf16.mxu0 0
        %1369 = vmatpush1.bf16.msra.mxu0 0
        %1370 = vmatprep.subr.bf16.mxu0 0
        %1371 = vmatpush1.bf16.msra.mxu0 %v1354
        %1372 = vmatprep.subr.bf16.mxu0 0
        %1373 = vmatpush2.bf16.msra.mxu0 0
        %1374 = vmatprep.subr.bf16.mxu0 0
        %1375 = vmatpush2.bf16.msra.mxu0 0
        %1376 = vmatprep.subr.bf16.mxu0 0
        %1377 = vmatpush2.bf16.msra.mxu0 0
        %1378 = vmatprep.subr.bf16.mxu0 0
        %1379 = vmatpush2.bf16.msra.mxu0 0
        %1380 = vmatprep.subr.bf16.mxu0 0
        %1381 = vmatpush2.bf16.msra.mxu0 0
        %1382 = vmatprep.subr.bf16.mxu0 0
        %1383 = vmatpush2.bf16.msra.mxu0 0
        %1384 = vmatprep.subr.bf16.mxu0 0
        %1385 = vmatpush2.bf16.msra.mxu0 0
        %1386 = vmatprep.subr.bf16.mxu0 0
        %1387 = vmatpush2.bf16.msra.mxu0 0
        %1388 = vmatprep.mubr.bf16.mxu0 0
        %1389 = vmatmul.mubr.bf16.gmra.mxu0 %v1351
        %v1390 = vpop.f32.mrf.mxu0
        %v1391 = vadd.f32 0.0, %v1390
        %v1392 = vpop.f32.mrf.mxu0
        %v1393 = vpop.f32.mrf.mxu0
        %v1394 = vpop.f32.mrf.mxu0
        %1395 = vdwg.mxu0
        %1396 = vrot.lane.b32.xlu0 %v555, 64
        %v1397 = vpop.permute.xlu0 %1396
        %v1399 = vsel %vm573, %v1058, 0
        %v1402 = vsel %vm1064, %v1397, 0
        %1404 = vmatprep.subr.bf16.mxu0 0
        %1405 = vmatpush1.bf16.msra.mxu0 0
        %1406 = vmatprep.subr.bf16.mxu0 0
        %1407 = vmatpush1.bf16.msra.mxu0 0
        %1408 = vmatprep.subr.bf16.mxu0 0
        %1409 = vmatpush1.bf16.msra.mxu0 0
        %1410 = vmatprep.subr.bf16.mxu0 0
        %1411 = vmatpush1.bf16.msra.mxu0 0
        %1412 = vmatprep.subr.bf16.mxu0 0
        %1413 = vmatpush1.bf16.msra.mxu0 0
        %1414 = vmatprep.subr.bf16.mxu0 0
        %1415 = vmatpush1.bf16.msra.mxu0 0
        %1416 = vmatprep.subr.bf16.mxu0 0
        %1417 = vmatpush1.bf16.msra.mxu0 0
        %1418 = vmatprep.subr.bf16.mxu0 0
        %1419 = vmatpush1.bf16.msra.mxu0 %v1402
        %1420 = vmatprep.subr.bf16.mxu0 0
        %1421 = vmatpush2.bf16.msra.mxu0 0
        %1422 = vmatprep.subr.bf16.mxu0 0
        %1423 = vmatpush2.bf16.msra.mxu0 0
        %1424 = vmatprep.subr.bf16.mxu0 0
        %1425 = vmatpush2.bf16.msra.mxu0 0
        %1426 = vmatprep.subr.bf16.mxu0 0
        %1427 = vmatpush2.bf16.msra.mxu0 0
        %1428 = vmatprep.subr.bf16.mxu0 0
        %1429 = vmatpush2.bf16.msra.mxu0 0
        %1430 = vmatprep.subr.bf16.mxu0 0
        %1431 = vmatpush2.bf16.msra.mxu0 0
        %1432 = vmatprep.subr.bf16.mxu0 0
        %1433 = vmatpush2.bf16.msra.mxu0 0
        %1434 = vmatprep.subr.bf16.mxu0 0
        %1435 = vmatpush2.bf16.msra.mxu0 0
        %1436 = vmatprep.mubr.bf16.mxu0 0
        %1437 = vmatmul.mubr.bf16.gmra.mxu0 %v1399
        %v1438 = vpop.f32.mrf.mxu0
        %v1439 = vadd.f32 0.0, %v1438
        %v1440 = vpop.f32.mrf.mxu0
        %v1441 = vpop.f32.mrf.mxu0
        %v1442 = vpop.f32.mrf.mxu0
        %1443 = vdwg.mxu0
        %1446 = vrot.lane.b32.xlu0 %v1199, 8
        %v1447 = vpop.permute.xlu0 %1446
        %1448 = vrot.lane.b32.xlu0 %v1247, 8
        %v1449 = vpop.permute.xlu0 %1448
        %1454 = vrot.lane.b32.xlu0 %v1295, 16
        %v1455 = vpop.permute.xlu0 %1454
        %1456 = vrot.lane.b32.xlu0 %v1343, 16
        %v1457 = vpop.permute.xlu0 %1456
        %1462 = vrot.lane.b32.xlu0 %v1391, 24
        %v1463 = vpop.permute.xlu0 %1462
        %1464 = vrot.lane.b32.xlu0 %v1439, 24
        %v1465 = vpop.permute.xlu0 %1464
        %v1468 = vsel %vm573, %v1103, %v1447
        %v1469 = vsel %vm573, %v1151, %v1449
        %vm1470 = vcmask 130048
        %v1471 = vsel %vm1470, %v1468, %v1455
        %v1472 = vsel %vm1470, %v1469, %v1457
        %vm1473 = vcmask 195584
        %v1474 = vsel %vm1473, %v1471, %v1463
        %v1475 = vsel %vm1473, %v1472, %v1465
        %v1476 = vpack.c.bf16 %v1475, %v1474
        %v1477 = vld [vmem:[#allocation10] sm:$0xf]
        %v1478 = vld [vmem:[#allocation10 + $0x4] sm:$0xf]
        %v1479 = vld [vmem:[#allocation10 + $0x8] sm:$0xf]
        %v1480 = vld [vmem:[#allocation10 + $0xc] sm:$0xf]
        %v1481 = vld [vmem:[%s8] sm:$0x1]
        %v1483 = vlaneseq
        %v1484 = vshrl.u32 %v1483, 7
        %v1485 = vsub.s32 0, %v1484
        %v1486 = vrot.slane %v1481, %v1485
        %v1492 = vunpack.c.l.b16 %v1477
        %v1493 = vunpack.c.l.b16 %v1478
        %v1494 = vunpack.c.l.b16 %v1479
        %v1495 = vunpack.c.l.b16 %v1480
        %v1496 = vpack.c.b16 %v1493, %v1492
        %v1497 = vpack.c.b16 %v1495, %v1494
        %v1501 = vsel %vm414, %v1476, 0
        %1503 = vmatprep.subr.bf16.mxu0 0
        %1504 = vmatpush1.bf16.msra.mxu0 0
        %1505 = vmatprep.subr.bf16.mxu0 0
        %1506 = vmatpush1.bf16.msra.mxu0 0
        %1507 = vmatprep.subr.bf16.mxu0 0
        %1508 = vmatpush1.bf16.msra.mxu0 0
        %1509 = vmatprep.subr.bf16.mxu0 0
        %1510 = vmatpush1.bf16.msra.mxu0 0
        %1511 = vmatprep.subr.bf16.mxu0 0
        %1512 = vmatpush1.bf16.msra.mxu0 0
        %1513 = vmatprep.subr.bf16.mxu0 0
        %1514 = vmatpush1.bf16.msra.mxu0 0
        %1515 = vmatprep.subr.bf16.mxu0 0
        %1516 = vmatpush1.bf16.msra.mxu0 %v1497
        %1517 = vmatprep.subr.bf16.mxu0 0
        %1518 = vmatpush1.bf16.msra.mxu0 %v1496
        %1519 = vmatprep.subr.bf16.mxu0 0
        %1520 = vmatpush2.bf16.msra.mxu0 0
        %1521 = vmatprep.subr.bf16.mxu0 0
        %1522 = vmatpush2.bf16.msra.mxu0 0
        %1523 = vmatprep.subr.bf16.mxu0 0
        %1524 = vmatpush2.bf16.msra.mxu0 0
        %1525 = vmatprep.subr.bf16.mxu0 0
        %1526 = vmatpush2.bf16.msra.mxu0 0
        %1527 = vmatprep.subr.bf16.mxu0 0
        %1528 = vmatpush2.bf16.msra.mxu0 0
        %1529 = vmatprep.subr.bf16.mxu0 0
        %1530 = vmatpush2.bf16.msra.mxu0 0
        %1531 = vmatprep.subr.bf16.mxu0 0
        %1532 = vmatpush2.bf16.msra.mxu0 0
        %1533 = vmatprep.subr.bf16.mxu0 0
        %1534 = vmatpush2.bf16.msra.mxu0 0
        %1535 = vmatprep.mubr.bf16.mxu0 0
        %1536 = vmatmul.mubr.bf16.gmra.mxu0 %v1501
        %v1537 = vpop.f32.mrf.mxu0
        %v1538 = vadd.f32 %v1486, %v1537
        %v1539 = vpop.f32.mrf.mxu0
        %v1540 = vpop.f32.mrf.mxu0
        %v1541 = vadd.f32 %v1486, %v1540
        %v1542 = vpop.f32.mrf.mxu0
        %1543 = vdwg.mxu0
        %1544 = vst.msk [vmem:[%s408] sm:$0xff] %vm414, %v1538
        %1545 = vst.msk [vmem:[%s408 + $0x8] sm:$0xff] %vm414, %v1541
        %s1546 = sand.u32 %s230, 1
        %s1547 = scalar_lea.sflag [#allocation4], %s1546
        %s1548 = sand.u32 %s230, 1
        %s1549 = smul.addr %s1548, 16
        %s1550 = scalar_lea.vmem [#allocation11], %s1549
        // Predicated region
        $region77: #{tpu_custom_call.1} parent=55 // pred_check
          %p1551 = pneg %p240
        $region78: #{tpu_custom_call.1} parent=55 // pred_check_branch
          %1553 = sbr.rel (%p1551) target = $region80
        $region79: #{tpu_custom_call.1} parent=55 // pred_region
          %s1554 = smul.u32 2, %s28
          %s1556 = ssub.s32 256, 256
          %1557 = vsyncadd %s1547, %s1556
          %s1558 = smul.addr %s1554, 128
          %s1559 = scalar_lea.hbm %s9, %s1558
          %s1560 = sshll.u32 %s1550, 4
          %s1561 = int_to_ptr.vmem [resolvable:$true] %s1560
          %1566 = dma.vmem_to_hbm [thread:$0]  %s1561, 256, %s1559, %s1547, 128, 128, 8
        $region80: #{tpu_custom_call.1} parent=55 // pred_fallthru
          _
      $region56: #{tpu_custom_call.1} parent=5 // pred_fallthru
        _
      %p1567 = scmp.le.s32.totalorder 2, %s23
      // Predicated region
      $region81: #{tpu_custom_call.1} parent=5 // pred_check
        %p1568 = pneg %p1567
      $region82: #{tpu_custom_call.1} parent=5 // pred_check_branch
        %1570 = sbr.rel (%p1568) target = $region84
      $region83: #{tpu_custom_call.1} parent=5 // pred_region
        %s1571 = ssub.s32 %s23, 2
        // Predicated region
        $region85: #{tpu_custom_call.1} parent=83 // pred_check
          %p1572 = pneg %p246
        $region86: #{tpu_custom_call.1} parent=83 // pred_check_branch
          %1574 = sbr.rel (%p1572) target = $region88
        $region87: #{tpu_custom_call.1} parent=83 // pred_region
          %s1575 = sand.u32 %s231, 1
          %s1576 = scalar_lea.sflag [#allocation4], %s1575
          %s1577 = sand.u32 %s231, 1
          %s1578 = smul.addr %s1577, 16
          %s1579 = scalar_lea.vmem [#allocation11], %s1578
          %1580 = dma.done %s1576, 256
        $region88: #{tpu_custom_call.1} parent=83 // pred_fallthru
          _
      $region84: #{tpu_custom_call.1} parent=5 // pred_fallthru
        _
    $region6: #{tpu_custom_call.1} parent=1 // loop_footer
      %s27 = sadd.s32 1, %s23
    $region7: #{tpu_custom_call.1} parent=1 // loop_footer_branch
      %22 = sbr.rel target = $region3
    $region8: #{tpu_custom_call.1} parent=1 // loop_exit
      _
    %1581 = vsyncpa [#allocation3], 1
    %s1582 = scalar_lea.sflag [#allocation3], 1
    %1583 = vsyncpa %s1582, 1
    %1584 = vsyncpa [#allocation6], 1
    %1585 = vsyncpa [#allocation9], 1
    %1586 = vsyncpa [#allocation4], 1
    %s1587 = scalar_lea.sflag [#allocation4], 1
    %1588 = vsyncpa %s1587, 1

</llo_original>
